<compile_context>
chip_gen: v7x
topology: tpu7x:2x2x1
jax: 0.10.0
libtpu: 0.0.40
codegen_flags: <defaults>
</compile_context>

<pallas_src>
import math
import functools

import jax
import jax.numpy as jnp
from jax.experimental import pallas as pl
from jax.experimental.pallas import tpu as pltpu

_VMEM_LIMIT = 64 * 1024 * 1024


# ----------------------------- helpers -----------------------------

def _pick_tm(M):
    """Row-tile size: (8,)-aligned, and >=2 grid steps when possible (2 TCs)."""
    candidates = (512, 256, 128, 64, 32, 16, 8)
    for tm in candidates:
        if M % tm == 0 and M // tm >= 2:
            return tm
    for tm in candidates:
        if M % tm == 0:
            return tm
    return M


def _layernorm_f32(x, g, b, eps=1e-5):
    """LayerNorm on an f32 value (biased variance, eps=1e-5 — matches torch)."""
    mean = jnp.mean(x, axis=-1, keepdims=True)
    var = jnp.mean(jnp.square(x - mean), axis=-1, keepdims=True)
    return (x - mean) * jax.lax.rsqrt(var + eps) * g + b


# ----------------------------- Pallas kernels -----------------------------

def _layernorm_kernel(x_ref, g_ref, b_ref, o_ref):
    x = x_ref[...].astype(jnp.float32)
    o_ref[...] = _layernorm_f32(x, g_ref[...], b_ref[...]).astype(o_ref.dtype)


def _mha_layer_kernel(x_ref, g_ref, b_ref, wqkv_ref, bqkv_ref, mask_ref,
                      wo_ref, bo_ref, o_ref, xn_s, acc_s, *, scale):
    """Fused LN1 + QKV + attention + out-proj + residual for one (batch, head).

    grid = (B, H); the output block index is constant across H, so the f32
    accumulator `acc_s` is resident across the head sweep (init at h==0,
    written back in bf16 at h==H-1).  All matmuls are bf16 x bf16 -> f32.
    """
    h = pl.program_id(1)

    @pl.when(h == 0)
    def _():
        xf = x_ref[0].astype(jnp.float32)
        xn = _layernorm_f32(xf, g_ref[...], b_ref[...])
        xn_s[...] = xn.astype(xn_s.dtype)                  # bf16 LN1(x), reused per head
        acc_s[...] = xf + bo_ref[...]                      # residual + out-proj bias

    # Per-head QKV projection: (S, D) bf16 @ (D, 3*dk) bf16 -> f32.
    qkv = jnp.dot(xn_s[...], wqkv_ref[0],
                  preferred_element_type=jnp.float32) + bqkv_ref[0]
    dk = qkv.shape[-1] // 3
    q = (qkv[:, :dk] * scale).astype(jnp.bfloat16)         # fold 1/sqrt(dk) into q
    k = qkv[:, dk:2 * dk].astype(jnp.bfloat16)
    v = qkv[:, 2 * dk:].astype(jnp.bfloat16)

    # scores = q @ k^T (contract last dims; no explicit transpose), additive mask.
    s = jax.lax.dot_general(q, k, (((1,), (1,)), ((), ())),
                            preferred_element_type=jnp.float32)
    s = s + mask_ref[0]                                    # (1, S) additive key-pad mask
    m = jnp.max(s, axis=-1, keepdims=True)
    p = jnp.exp(s - m)
    denom = jnp.sum(p, axis=-1, keepdims=True)
    p = p * pl.reciprocal(denom, approx=True)              # EUP slot, ~free

    ctx = jnp.dot(p.astype(jnp.bfloat16), v,
                  preferred_element_type=jnp.float32)      # (S, dk)
    # concat(ctx_h) @ Wo  ==  sum_h ctx_h @ Wo[h*dk:(h+1)*dk, :]
    acc_s[...] += jnp.dot(ctx.astype(jnp.bfloat16), wo_ref[0],
                          preferred_element_type=jnp.float32)

    @pl.when(h == pl.num_programs(1) - 1)
    def _():
        o_ref[0] = acc_s[...].astype(o_ref.dtype)


def _ln_ffn_residual_kernel(x_ref, g_ref, b_ref, w1_ref, b1_ref, w2_ref, b2_ref,
                            o_ref):
    """Fused LN2 + FFN + residual: out = x + W2(relu(W1(LN(x)))).

    The (tm, d_ff) hidden activation never leaves VMEM/vregs.
    """
    x = x_ref[...].astype(jnp.float32)
    xn = _layernorm_f32(x, g_ref[...], b_ref[...]).astype(w1_ref.dtype)
    hid = jnp.dot(xn, w1_ref[...], preferred_element_type=jnp.float32) + b1_ref[...]
    hid = jnp.maximum(hid, 0.0).astype(w2_ref.dtype)
    y = jnp.dot(hid, w2_ref[...], preferred_element_type=jnp.float32) + b2_ref[...]
    o_ref[...] = (x + y).astype(o_ref.dtype)


# ----------------------------- pallas_call wrappers ------------------------

def layernorm_pallas(x2d, gamma, beta, out_dtype):
    M, D = x2d.shape
    tm = _pick_tm(M)
    cost = pl.CostEstimate(flops=int(10 * M * D), transcendentals=int(M),
                           bytes_accessed=int(x2d.size * x2d.dtype.itemsize
                                              + M * D * jnp.dtype(out_dtype).itemsize))
    return pl.pallas_call(
        _layernorm_kernel,
        grid=(M // tm,),
        in_specs=[
            pl.BlockSpec((tm, D), lambda i: (i, 0)),
            pl.BlockSpec((1, D), lambda i: (0, 0)),
            pl.BlockSpec((1, D), lambda i: (0, 0)),
        ],
        out_specs=pl.BlockSpec((tm, D), lambda i: (i, 0)),
        out_shape=jax.ShapeDtypeStruct((M, D), out_dtype),
        compiler_params=pltpu.CompilerParams(dimension_semantics=("parallel",),
                                             vmem_limit_bytes=_VMEM_LIMIT),
        cost_estimate=cost,
    )(x2d, gamma.reshape(1, D), beta.reshape(1, D))


def mha_layer_pallas(x, addmask, p, n_heads):
    """x: (B, S, D) bf16, addmask: (B, 1, S) f32 additive mask. Returns bf16."""
    B, S, D = x.shape
    dk = D // n_heads
    kern = functools.partial(_mha_layer_kernel, scale=1.0 / math.sqrt(dk))
    cost = pl.CostEstimate(
        flops=int(B * n_heads * (2 * S * D * 3 * dk + 4 * S * S * dk + 2 * S * dk * D)
                  + 10 * B * S * D),
        transcendentals=int(B * n_heads * S * S + B * S),
        bytes_accessed=int(4 * B * S * D * 2 + B * S * 4 + 4 * D * D * 2),
    )
    return pl.pallas_call(
        kern,
        grid=(B, n_heads),
        in_specs=[
            pl.BlockSpec((1, S, D), lambda b, h: (b, 0, 0)),          # x (residual)
            pl.BlockSpec((1, D), lambda b, h: (0, 0)),                # ln1 gamma
            pl.BlockSpec((1, D), lambda b, h: (0, 0)),                # ln1 beta
            pl.BlockSpec((1, D, 3 * dk), lambda b, h: (h, 0, 0)),     # per-head Wqkv
            pl.BlockSpec((1, 1, 3 * dk), lambda b, h: (h, 0, 0)),     # per-head bqkv
            pl.BlockSpec((1, 1, S), lambda b, h: (b, 0, 0)),          # additive mask
            pl.BlockSpec((1, dk, D), lambda b, h: (h, 0, 0)),         # per-head Wo slice
            pl.BlockSpec((1, D), lambda b, h: (0, 0)),                # bo
        ],
        out_specs=pl.BlockSpec((1, S, D), lambda b, h: (b, 0, 0)),
        out_shape=jax.ShapeDtypeStruct((B, S, D), jnp.bfloat16),
        scratch_shapes=[pltpu.VMEM((S, D), jnp.bfloat16),             # LN1(x)
                        pltpu.VMEM((S, D), jnp.float32)],             # residual+attn acc
        compiler_params=pltpu.CompilerParams(
            dimension_semantics=("parallel", "arbitrary"),
            vmem_limit_bytes=_VMEM_LIMIT),
        cost_estimate=cost,
    )(x, p["ln1_g"].reshape(1, D), p["ln1_b"].reshape(1, D),
      p["wqkv_h"], p["bqkv_h"], addmask, p["wo_h"], p["bo"].reshape(1, D))


def ln_ffn_residual_pallas(x2d, gamma, beta, w1, b1, w2, b2):
    M, D = x2d.shape
    DFF = w1.shape[1]
    tm = _pick_tm(M)
    cost = pl.CostEstimate(
        flops=int(4 * M * D * DFF + 12 * M * D),
        transcendentals=int(M),
        bytes_accessed=int(2 * M * D * 2 + 2 * D * DFF * 2),
    )
    return pl.pallas_call(
        _ln_ffn_residual_kernel,
        grid=(M // tm,),
        in_specs=[
            pl.BlockSpec((tm, D), lambda i: (i, 0)),
            pl.BlockSpec((1, D), lambda i: (0, 0)),
            pl.BlockSpec((1, D), lambda i: (0, 0)),
            pl.BlockSpec((D, DFF), lambda i: (0, 0)),
            pl.BlockSpec((1, DFF), lambda i: (0, 0)),
            pl.BlockSpec((DFF, D), lambda i: (0, 0)),
            pl.BlockSpec((1, D), lambda i: (0, 0)),
        ],
        out_specs=pl.BlockSpec((tm, D), lambda i: (i, 0)),
        out_shape=jax.ShapeDtypeStruct((M, D), jnp.bfloat16),
        compiler_params=pltpu.CompilerParams(dimension_semantics=("parallel",),
                                             vmem_limit_bytes=_VMEM_LIMIT),
        cost_estimate=cost,
    )(x2d, gamma.reshape(1, D), beta.reshape(1, D),
      w1, b1.reshape(1, DFF), w2, b2.reshape(1, D))


# ----------------------------- model wrappers ------------------------------

def encoder_layer(x, addmask, p, n_heads):
    B, S, D = x.shape
    # Sublayer 1: x + OutProj(SelfAttn(LN1(x)))   (fused, dropout = 0)
    x = mha_layer_pallas(x, addmask, p, n_heads)
    # Sublayer 2: x + FFN(LN2(x))   (fused, hidden stays on-chip)
    x = ln_ffn_residual_pallas(x.reshape(B * S, D), p["ln2_g"], p["ln2_b"],
                               p["w1"], p["b1"], p["w2"], p["b2"])
    return x.reshape(B, S, D)


def baseline_encoder(x, mask, layer_params, norm_g, norm_b, norm2_g, norm2_b,
                     n_heads):
    N = len(layer_params)
    B, S, D = x.shape
    # additive key-padding mask: 0 where attend, -1e9 where masked (== masked_fill)
    addmask = (mask.reshape(B, 1, S).astype(jnp.float32) - 1.0) * 1e9
    x = x.astype(jnp.bfloat16)                      # bf16 residual stream
    for idx, p in enumerate(layer_params, start=1):
        x = encoder_layer(x, addmask, p, n_heads)
        if idx == N // 2 and N > 1:
            x = layernorm_pallas(x.reshape(B * S, D), norm2_g, norm2_b,
                                 jnp.bfloat16).reshape(B, S, D)
    return layernorm_pallas(x.reshape(B * S, D), norm_g, norm_b,
                            jnp.float32).reshape(B, S, D)


# ----------------------------- parameter init ------------------------------

def init_layer_params(key, d_model, d_ff, n_heads):
    dk = d_model // n_heads
    ks = jax.random.split(key, 6)
    scale = 0.02

    def w(k, shape):  # weights stored bf16 (MXU-native); biases / LN params f32
        return (scale * jax.random.normal(k, shape, jnp.float32)).astype(jnp.bfloat16)

    wq = w(ks[0], (d_model, d_model))
    wk = w(ks[1], (d_model, d_model))
    wv = w(ks[2], (d_model, d_model))
    # Head-major fused QKV weight: wqkv_h[h] = [Wq_h | Wk_h | Wv_h]  (D, 3*dk),
    # so head selection in the kernel is pure BlockSpec/DMA (no lane slicing).
    wqkv_h = jnp.concatenate([wq.reshape(d_model, n_heads, dk),
                              wk.reshape(d_model, n_heads, dk),
                              wv.reshape(d_model, n_heads, dk)], axis=-1)
    wqkv_h = jnp.transpose(wqkv_h, (1, 0, 2))                 # (H, D, 3*dk)
    wo = w(ks[3], (d_model, d_model))
    return {
        "wqkv_h": wqkv_h,
        "bqkv_h": jnp.zeros((n_heads, 1, 3 * dk), jnp.float32),
        "wo_h": wo.reshape(n_heads, dk, d_model),             # (H, dk, D)
        "bo": jnp.zeros((d_model,), jnp.float32),
        "w1": w(ks[4], (d_model, d_ff)),
        "b1": jnp.zeros((d_ff,), jnp.float32),
        "w2": w(ks[5], (d_ff, d_model)),
        "b2": jnp.zeros((d_model,), jnp.float32),
        "ln1_g": jnp.ones((d_model,), jnp.float32),
        "ln1_b": jnp.zeros((d_model,), jnp.float32),
        "ln2_g": jnp.ones((d_model,), jnp.float32),
        "ln2_b": jnp.zeros((d_model,), jnp.float32),
    }


if __name__ == "__main__":
    B, S, D, H, N_LAYERS, D_FF = 2, 8, 32, 4, 2, 64

    key = jax.random.PRNGKey(0)
    kx, kp = jax.random.split(key)

    x = jax.random.normal(kx, (B, S, D), jnp.float32)
    # key-padding mask (1 = attend, 0 = masked); second example is shorter.
    lengths = jnp.array([S, 5], jnp.int32)
    mask = (jnp.arange(S)[None, :] < lengths[:, None]).astype(jnp.float32)  # (B, S)

    # `clones` deep-copies one layer -> all N layers start with identical params.
    layer_p = init_layer_params(kp, D, D_FF, H)
    layer_params = [layer_p] * N_LAYERS

    norm_g = jnp.ones((D,), jnp.float32)
    norm_b = jnp.zeros((D,), jnp.float32)
    norm2_g = jnp.ones((D,), jnp.float32)
    norm2_b = jnp.zeros((D,), jnp.float32)

    fwd = jax.jit(functools.partial(baseline_encoder, n_heads=H))
    out = fwd(x, mask, layer_params, norm_g, norm_b, norm2_g, norm2_b)
    jax.block_until_ready(out)
    assert out.shape == (B, S, D) and out.dtype == jnp.float32
    assert bool(jnp.all(jnp.isfinite(out)))
    print("KERNEL_OK")
</pallas_src>

<mosaic_0001>
module attributes {stable_mosaic.version = 11 : i64} {
  func.func @_mha_layer_kernel(%arg0: i32, %arg1: i32, %arg2: memref<1x8x32xbf16, #tpu.memory_space<vmem>>, %arg3: memref<1x32xf32, #tpu.memory_space<vmem>>, %arg4: memref<1x32xf32, #tpu.memory_space<vmem>>, %arg5: memref<1x32x24xbf16, #tpu.memory_space<vmem>>, %arg6: memref<1x1x24xf32, #tpu.memory_space<vmem>>, %arg7: memref<1x1x8xf32, #tpu.memory_space<vmem>>, %arg8: memref<1x8x32xbf16, #tpu.memory_space<vmem>>, %arg9: memref<1x32xf32, #tpu.memory_space<vmem>>, %arg10: memref<1x8x32xbf16, #tpu.memory_space<vmem>>, %arg11: memref<8x32xbf16, #tpu.memory_space<vmem>>, %arg12: memref<8x32xf32, #tpu.memory_space<vmem>>) attributes {dimension_semantics = [#tpu.dimension_semantics<parallel>, #tpu.dimension_semantics<arbitrary>], iteration_bounds = array<i64: 2, 4>, scalar_prefetch = 0 : i64, scratch_operands = 2 : i64, tpu.core_type = #tpu.core_type<tc>, window_params = [{transform_indices = @transform_0, window_bounds = array<i64: 1, 8, 32>}, {pipeline_mode = #tpu.pipeline_mode<synchronous>, transform_indices = @transform_1, window_bounds = array<i64: 1, 32>}, {pipeline_mode = #tpu.pipeline_mode<synchronous>, transform_indices = @transform_2, window_bounds = array<i64: 1, 32>}, {transform_indices = @transform_3, window_bounds = array<i64: 1, 32, 24>}, {transform_indices = @transform_4, window_bounds = array<i64: 1, 1, 24>}, {transform_indices = @transform_5, window_bounds = array<i64: 1, 1, 8>}, {transform_indices = @transform_6, window_bounds = array<i64: 1, 8, 32>}, {pipeline_mode = #tpu.pipeline_mode<synchronous>, transform_indices = @transform_7, window_bounds = array<i64: 1, 32>}, {transform_indices = @transform_8, window_bounds = array<i64: 1, 8, 32>}]} {
    %c0_i32 = arith.constant 0 : i32
    %0 = arith.cmpi eq, %arg1, %c0_i32 : i32
    %1 = arith.extui %0 : i1 to i32
    %c0_i32_0 = arith.constant 0 : i32
    %2 = arith.cmpi ne, %1, %c0_i32_0 : i32
    scf.if %2 {
      %c0_25 = arith.constant 0 : index
      %c0_26 = arith.constant 0 : index
      %c0_27 = arith.constant 0 : index
      %46 = vector.load %arg2[%c0_25, %c0_26, %c0_27] : memref<1x8x32xbf16, #tpu.memory_space<vmem>>, vector<1x8x32xbf16>
      %47 = vector.shape_cast %46 : vector<1x8x32xbf16> to vector<8x32xbf16>
      %48 = arith.extf %47 : vector<8x32xbf16> to vector<8x32xf32>
      %c0_28 = arith.constant 0 : index
      %c0_29 = arith.constant 0 : index
      %49 = vector.load %arg3[%c0_28, %c0_29] : memref<1x32xf32, #tpu.memory_space<vmem>>, vector<1x32xf32>
      %c0_30 = arith.constant 0 : index
      %c0_31 = arith.constant 0 : index
      %50 = vector.load %arg4[%c0_30, %c0_31] : memref<1x32xf32, #tpu.memory_space<vmem>>, vector<1x32xf32>
      %cst_32 = arith.constant dense<0.000000e+00> : vector<8xf32>
      %51 = vector.multi_reduction <add>, %48, %cst_32 [1] : vector<8x32xf32> to vector<8xf32>
      %52 = vector.shape_cast %51 : vector<8xf32> to vector<8x1xf32>
      %cst_33 = arith.constant 3.200000e+01 : f32
      %53 = vector.broadcast %cst_33 : f32 to vector<8x1xf32>
      %54 = arith.divf %52, %53 : vector<8x1xf32>
      %55 = vector.broadcast %54 : vector<8x1xf32> to vector<8x32xf32>
      %56 = arith.subf %48, %55 : vector<8x32xf32>
      %57 = arith.mulf %56, %56 : vector<8x32xf32>
      %cst_34 = arith.constant dense<0.000000e+00> : vector<8xf32>
      %58 = vector.multi_reduction <add>, %57, %cst_34 [1] : vector<8x32xf32> to vector<8xf32>
      %59 = vector.shape_cast %58 : vector<8xf32> to vector<8x1xf32>
      %cst_35 = arith.constant 3.200000e+01 : f32
      %60 = vector.broadcast %cst_35 : f32 to vector<8x1xf32>
      %61 = arith.divf %59, %60 : vector<8x1xf32>
      %62 = vector.broadcast %54 : vector<8x1xf32> to vector<8x32xf32>
      %63 = arith.subf %48, %62 : vector<8x32xf32>
      %cst_36 = arith.constant 9.99999974E-6 : f32
      %64 = vector.broadcast %cst_36 : f32 to vector<8x1xf32>
      %65 = arith.addf %61, %64 : vector<8x1xf32>
      %66 = math.rsqrt %65 : vector<8x1xf32>
      %67 = vector.broadcast %66 : vector<8x1xf32> to vector<8x32xf32>
      %68 = arith.mulf %63, %67 : vector<8x32xf32>
      %69 = vector.broadcast %49 : vector<1x32xf32> to vector<8x32xf32>
      %70 = arith.mulf %68, %69 : vector<8x32xf32>
      %71 = vector.broadcast %50 : vector<1x32xf32> to vector<8x32xf32>
      %72 = arith.addf %70, %71 : vector<8x32xf32>
      %73 = arith.truncf %72 : vector<8x32xf32> to vector<8x32xbf16>
      %c0_37 = arith.constant 0 : index
      %c0_38 = arith.constant 0 : index
      %74 = vector.load %arg11[%c0_37, %c0_38] : memref<8x32xbf16, #tpu.memory_space<vmem>>, vector<8x32xbf16>
      tpu.vector_store %arg11[%c0_37, %c0_38], %73 {strides = array<i32>} : memref<8x32xbf16, #tpu.memory_space<vmem>>, vector<8x32xbf16>,
      %c0_39 = arith.constant 0 : index
      %c0_40 = arith.constant 0 : index
      %75 = vector.load %arg9[%c0_39, %c0_40] : memref<1x32xf32, #tpu.memory_space<vmem>>, vector<1x32xf32>
      %76 = vector.broadcast %75 : vector<1x32xf32> to vector<8x32xf32>
      %77 = arith.addf %48, %76 : vector<8x32xf32>
      %c0_41 = arith.constant 0 : index
      %c0_42 = arith.constant 0 : index
      %78 = vector.load %arg12[%c0_41, %c0_42] : memref<8x32xf32, #tpu.memory_space<vmem>>, vector<8x32xf32>
      tpu.vector_store %arg12[%c0_41, %c0_42], %77 {strides = array<i32>} : memref<8x32xf32, #tpu.memory_space<vmem>>, vector<8x32xf32>,
    } else {
    }
    %c0 = arith.constant 0 : index
    %c0_1 = arith.constant 0 : index
    %3 = vector.load %arg11[%c0, %c0_1] : memref<8x32xbf16, #tpu.memory_space<vmem>>, vector<8x32xbf16>
    %c0_2 = arith.constant 0 : index
    %c0_3 = arith.constant 0 : index
    %c0_4 = arith.constant 0 : index
    %4 = vector.load %arg5[%c0_2, %c0_3, %c0_4] : memref<1x32x24xbf16, #tpu.memory_space<vmem>>, vector<1x32x24xbf16>
    %5 = vector.shape_cast %4 : vector<1x32x24xbf16> to vector<32x24xbf16>
    %cst = arith.constant dense<0.000000e+00> : vector<8x24xf32>
    %6 = tpu.matmul %3, %5, %cst {dimension_numbers = #tpu.dot_dimension_numbers<[1], [0], [0], [1], [0, 0, 1, 1], [], []>} : vector<8x32xbf16>, vector<32x24xbf16>, vector<8x24xf32> -> vector<8x24xf32>
    %c0_5 = arith.constant 0 : index
    %c0_6 = arith.constant 0 : index
    %c0_7 = arith.constant 0 : index
    %7 = vector.load %arg6[%c0_5, %c0_6, %c0_7] : memref<1x1x24xf32, #tpu.memory_space<vmem>>, vector<1x1x24xf32>
    %8 = vector.shape_cast %7 : vector<1x1x24xf32> to vector<1x24xf32>
    %9 = vector.broadcast %8 : vector<1x24xf32> to vector<8x24xf32>
    %10 = arith.addf %6, %9 : vector<8x24xf32>
    %11 = vector.extract_strided_slice %10 {offsets = [0, 0], sizes = [8, 8], strides = [1, 1]} : vector<8x24xf32> to vector<8x8xf32>
    %cst_8 = arith.constant 0.353553385 : f32
    %12 = vector.broadcast %cst_8 : f32 to vector<8x8xf32>
    %13 = arith.mulf %11, %12 : vector<8x8xf32>
    %14 = arith.truncf %13 : vector<8x8xf32> to vector<8x8xbf16>
    %15 = vector.extract_strided_slice %10 {offsets = [0, 8], sizes = [8, 8], strides = [1, 1]} : vector<8x24xf32> to vector<8x8xf32>
    %16 = arith.truncf %15 : vector<8x8xf32> to vector<8x8xbf16>
    %17 = vector.extract_strided_slice %10 {offsets = [0, 16], sizes = [8, 8], strides = [1, 1]} : vector<8x24xf32> to vector<8x8xf32>
    %18 = arith.truncf %17 : vector<8x8xf32> to vector<8x8xbf16>
    %cst_9 = arith.constant dense<0.000000e+00> : vector<8x8xf32>
    %19 = tpu.matmul %14, %16, %cst_9 {dimension_numbers = #tpu.dot_dimension_numbers<[1], [1], [0], [0], [0, 0, 1, 0], [], []>} : vector<8x8xbf16>, vector<8x8xbf16>, vector<8x8xf32> -> vector<8x8xf32>
    %c0_10 = arith.constant 0 : index
    %c0_11 = arith.constant 0 : index
    %c0_12 = arith.constant 0 : index
    %20 = vector.load %arg7[%c0_10, %c0_11, %c0_12] : memref<1x1x8xf32, #tpu.memory_space<vmem>>, vector<1x1x8xf32>
    %21 = vector.shape_cast %20 : vector<1x1x8xf32> to vector<1x8xf32>
    %22 = vector.broadcast %21 : vector<1x8xf32> to vector<8x8xf32>
    %23 = arith.addf %19, %22 : vector<8x8xf32>
    %cst_13 = arith.constant dense<0xFF800000> : vector<8xf32>
    %24 = vector.multi_reduction <maximumf>, %23, %cst_13 [1] : vector<8x8xf32> to vector<8xf32>
    %25 = vector.shape_cast %24 : vector<8xf32> to vector<8x1xf32>
    %26 = vector.broadcast %25 : vector<8x1xf32> to vector<8x8xf32>
    %27 = arith.subf %23, %26 : vector<8x8xf32>
    %28 = math.exp %27 : vector<8x8xf32>
    %cst_14 = arith.constant dense<0.000000e+00> : vector<8xf32>
    %29 = vector.multi_reduction <add>, %28, %cst_14 [1] : vector<8x8xf32> to vector<8xf32>
    %30 = vector.shape_cast %29 : vector<8xf32> to vector<8x1xf32>
    %31 = tpu.reciprocal %30 {approx = true} : vector<8x1xf32> -> vector<8x1xf32>
    %32 = vector.broadcast %31 : vector<8x1xf32> to vector<8x8xf32>
    %33 = arith.mulf %28, %32 : vector<8x8xf32>
    %34 = arith.truncf %33 : vector<8x8xf32> to vector<8x8xbf16>
    %cst_15 = arith.constant dense<0.000000e+00> : vector<8x8xf32>
    %35 = tpu.matmul %34, %18, %cst_15 {dimension_numbers = #tpu.dot_dimension_numbers<[1], [0], [0], [1], [0, 0, 1, 1], [], []>} : vector<8x8xbf16>, vector<8x8xbf16>, vector<8x8xf32> -> vector<8x8xf32>
    %c0_16 = arith.constant 0 : index
    %c0_17 = arith.constant 0 : index
    %36 = vector.load %arg12[%c0_16, %c0_17] : memref<8x32xf32, #tpu.memory_space<vmem>>, vector<8x32xf32>
    %37 = arith.truncf %35 : vector<8x8xf32> to vector<8x8xbf16>
    %c0_18 = arith.constant 0 : index
    %c0_19 = arith.constant 0 : index
    %c0_20 = arith.constant 0 : index
    %38 = vector.load %arg8[%c0_18, %c0_19, %c0_20] : memref<1x8x32xbf16, #tpu.memory_space<vmem>>, vector<1x8x32xbf16>
    %39 = vector.shape_cast %38 : vector<1x8x32xbf16> to vector<8x32xbf16>
    %cst_21 = arith.constant dense<0.000000e+00> : vector<8x32xf32>
    %40 = tpu.matmul %37, %39, %cst_21 {dimension_numbers = #tpu.dot_dimension_numbers<[1], [0], [0], [1], [0, 0, 1, 1], [], []>} : vector<8x8xbf16>, vector<8x32xbf16>, vector<8x32xf32> -> vector<8x32xf32>
    %41 = arith.addf %36, %40 : vector<8x32xf32>
    %c0_22 = arith.constant 0 : index
    %c0_23 = arith.constant 0 : index
    %42 = vector.load %arg12[%c0_22, %c0_23] : memref<8x32xf32, #tpu.memory_space<vmem>>, vector<8x32xf32>
    tpu.vector_store %arg12[%c0_22, %c0_23], %41 {strides = array<i32>} : memref<8x32xf32, #tpu.memory_space<vmem>>, vector<8x32xf32>,
    %c3_i32 = arith.constant 3 : i32
    %43 = arith.cmpi eq, %arg1, %c3_i32 : i32
    %44 = arith.extui %43 : i1 to i32
    %c0_i32_24 = arith.constant 0 : i32
    %45 = arith.cmpi ne, %44, %c0_i32_24 : i32
    scf.if %45 {
      %c0_25 = arith.constant 0 : index
      %c0_26 = arith.constant 0 : index
      %46 = vector.load %arg12[%c0_25, %c0_26] : memref<8x32xf32, #tpu.memory_space<vmem>>, vector<8x32xf32>
      %47 = arith.truncf %46 : vector<8x32xf32> to vector<8x32xbf16>
      %c0_27 = arith.constant 0 : index
      %c0_28 = arith.constant 0 : index
      %c0_29 = arith.constant 0 : index
      %48 = vector.load %arg10[%c0_27, %c0_28, %c0_29] : memref<1x8x32xbf16, #tpu.memory_space<vmem>>, vector<1x8x32xbf16>
      %49 = vector.shape_cast %48 : vector<1x8x32xbf16> to vector<8x32xbf16>
      %50 = vector.shape_cast %47 : vector<8x32xbf16> to vector<1x8x32xbf16>
      tpu.vector_store %arg10[%c0_27, %c0_28, %c0_29], %50 {strides = array<i32>} : memref<1x8x32xbf16, #tpu.memory_space<vmem>>, vector<1x8x32xbf16>,
    } else {
    }
    return
  }
  func.func @transform_0(%arg0: i32, %arg1: i32) -> (i32, i32, i32) {
    %c0_i32 = arith.constant 0 : i32
    %c0_i32_0 = arith.constant 0 : i32
    %c0_i32_1 = arith.constant 0 : i32
    return %arg0, %c0_i32, %c0_i32_0 : i32, i32, i32
  }
  func.func @transform_1(%arg0: i32, %arg1: i32) -> (i32, i32) {
    %c0_i32 = arith.constant 0 : i32
    %c0_i32_0 = arith.constant 0 : i32
    %c0_i32_1 = arith.constant 0 : i32
    return %c0_i32, %c0_i32_0 : i32, i32
  }
  func.func @transform_2(%arg0: i32, %arg1: i32) -> (i32, i32) {
    %c0_i32 = arith.constant 0 : i32
    %c0_i32_0 = arith.constant 0 : i32
    %c0_i32_1 = arith.constant 0 : i32
    return %c0_i32, %c0_i32_0 : i32, i32
  }
  func.func @transform_3(%arg0: i32, %arg1: i32) -> (i32, i32, i32) {
    %c0_i32 = arith.constant 0 : i32
    %c0_i32_0 = arith.constant 0 : i32
    %c0_i32_1 = arith.constant 0 : i32
    return %arg1, %c0_i32, %c0_i32_0 : i32, i32, i32
  }
  func.func @transform_4(%arg0: i32, %arg1: i32) -> (i32, i32, i32) {
    %c0_i32 = arith.constant 0 : i32
    %c0_i32_0 = arith.constant 0 : i32
    %c0_i32_1 = arith.constant 0 : i32
    return %arg1, %c0_i32, %c0_i32_0 : i32, i32, i32
  }
  func.func @transform_5(%arg0: i32, %arg1: i32) -> (i32, i32, i32) {
    %c0_i32 = arith.constant 0 : i32
    %c0_i32_0 = arith.constant 0 : i32
    %c0_i32_1 = arith.constant 0 : i32
    return %arg0, %c0_i32, %c0_i32_0 : i32, i32, i32
  }
  func.func @transform_6(%arg0: i32, %arg1: i32) -> (i32, i32, i32) {
    %c0_i32 = arith.constant 0 : i32
    %c0_i32_0 = arith.constant 0 : i32
    %c0_i32_1 = arith.constant 0 : i32
    return %arg1, %c0_i32, %c0_i32_0 : i32, i32, i32
  }
  func.func @transform_7(%arg0: i32, %arg1: i32) -> (i32, i32) {
    %c0_i32 = arith.constant 0 : i32
    %c0_i32_0 = arith.constant 0 : i32
    %c0_i32_1 = arith.constant 0 : i32
    return %c0_i32, %c0_i32_0 : i32, i32
  }
  func.func @transform_8(%arg0: i32, %arg1: i32) -> (i32, i32, i32) {
    %c0_i32 = arith.constant 0 : i32
    %c0_i32_0 = arith.constant 0 : i32
    %c0_i32_1 = arith.constant 0 : i32
    return %arg0, %c0_i32, %c0_i32_0 : i32, i32, i32
  }
}

module attributes {stable_mosaic.version = 11 : i64} {
  func.func @_layernorm_kernel(%arg0: i32, %arg1: memref<8x32xbf16, #tpu.memory_space<vmem>>, %arg2: memref<1x32xf32, #tpu.memory_space<vmem>>, %arg3: memref<1x32xf32, #tpu.memory_space<vmem>>, %arg4: memref<8x32xbf16, #tpu.memory_space<vmem>>) attributes {dimension_semantics = [#tpu.dimension_semantics<parallel>], iteration_bounds = array<i64: 2>, scalar_prefetch = 0 : i64, scratch_operands = 0 : i64, tpu.core_type = #tpu.core_type<tc>, window_params = [{transform_indices = @transform_0, window_bounds = array<i64: 8, 32>}, {pipeline_mode = #tpu.pipeline_mode<synchronous>, transform_indices = @transform_1, window_bounds = array<i64: 1, 32>}, {pipeline_mode = #tpu.pipeline_mode<synchronous>, transform_indices = @transform_2, window_bounds = array<i64: 1, 32>}, {transform_indices = @transform_3, window_bounds = array<i64: 8, 32>}]} {
    %c0 = arith.constant 0 : index
    %c0_0 = arith.constant 0 : index
    %0 = vector.load %arg1[%c0, %c0_0] : memref<8x32xbf16, #tpu.memory_space<vmem>>, vector<8x32xbf16>
    %1 = arith.extf %0 : vector<8x32xbf16> to vector<8x32xf32>
    %c0_1 = arith.constant 0 : index
    %c0_2 = arith.constant 0 : index
    %2 = vector.load %arg2[%c0_1, %c0_2] : memref<1x32xf32, #tpu.memory_space<vmem>>, vector<1x32xf32>
    %c0_3 = arith.constant 0 : index
    %c0_4 = arith.constant 0 : index
    %3 = vector.load %arg3[%c0_3, %c0_4] : memref<1x32xf32, #tpu.memory_space<vmem>>, vector<1x32xf32>
    %cst = arith.constant dense<0.000000e+00> : vector<8xf32>
    %4 = vector.multi_reduction <add>, %1, %cst [1] : vector<8x32xf32> to vector<8xf32>
    %5 = vector.shape_cast %4 : vector<8xf32> to vector<8x1xf32>
    %cst_5 = arith.constant 3.200000e+01 : f32
    %6 = vector.broadcast %cst_5 : f32 to vector<8x1xf32>
    %7 = arith.divf %5, %6 : vector<8x1xf32>
    %8 = vector.broadcast %7 : vector<8x1xf32> to vector<8x32xf32>
    %9 = arith.subf %1, %8 : vector<8x32xf32>
    %10 = arith.mulf %9, %9 : vector<8x32xf32>
    %cst_6 = arith.constant dense<0.000000e+00> : vector<8xf32>
    %11 = vector.multi_reduction <add>, %10, %cst_6 [1] : vector<8x32xf32> to vector<8xf32>
    %12 = vector.shape_cast %11 : vector<8xf32> to vector<8x1xf32>
    %cst_7 = arith.constant 3.200000e+01 : f32
    %13 = vector.broadcast %cst_7 : f32 to vector<8x1xf32>
    %14 = arith.divf %12, %13 : vector<8x1xf32>
    %15 = vector.broadcast %7 : vector<8x1xf32> to vector<8x32xf32>
    %16 = arith.subf %1, %15 : vector<8x32xf32>
    %cst_8 = arith.constant 9.99999974E-6 : f32
    %17 = vector.broadcast %cst_8 : f32 to vector<8x1xf32>
    %18 = arith.addf %14, %17 : vector<8x1xf32>
    %19 = math.rsqrt %18 : vector<8x1xf32>
    %20 = vector.broadcast %19 : vector<8x1xf32> to vector<8x32xf32>
    %21 = arith.mulf %16, %20 : vector<8x32xf32>
    %22 = vector.broadcast %2 : vector<1x32xf32> to vector<8x32xf32>
    %23 = arith.mulf %21, %22 : vector<8x32xf32>
    %24 = vector.broadcast %3 : vector<1x32xf32> to vector<8x32xf32>
    %25 = arith.addf %23, %24 : vector<8x32xf32>
    %26 = arith.truncf %25 : vector<8x32xf32> to vector<8x32xbf16>
    %c0_9 = arith.constant 0 : index
    %c0_10 = arith.constant 0 : index
    %27 = vector.load %arg4[%c0_9, %c0_10] : memref<8x32xbf16, #tpu.memory_space<vmem>>, vector<8x32xbf16>
    tpu.vector_store %arg4[%c0_9, %c0_10], %26 {strides = array<i32>} : memref<8x32xbf16, #tpu.memory_space<vmem>>, vector<8x32xbf16>,
    return
  }
  func.func @transform_0(%arg0: i32) -> (i32, i32) {
    %c0_i32 = arith.constant 0 : i32
    %c0_i32_0 = arith.constant 0 : i32
    return %arg0, %c0_i32 : i32, i32
  }
  func.func @transform_1(%arg0: i32) -> (i32, i32) {
    %c0_i32 = arith.constant 0 : i32
    %c0_i32_0 = arith.constant 0 : i32
    %c0_i32_1 = arith.constant 0 : i32
    return %c0_i32, %c0_i32_0 : i32, i32
  }
  func.func @transform_2(%arg0: i32) -> (i32, i32) {
    %c0_i32 = arith.constant 0 : i32
    %c0_i32_0 = arith.constant 0 : i32
    %c0_i32_1 = arith.constant 0 : i32
    return %c0_i32, %c0_i32_0 : i32, i32
  }
  func.func @transform_3(%arg0: i32) -> (i32, i32) {
    %c0_i32 = arith.constant 0 : i32
    %c0_i32_0 = arith.constant 0 : i32
    return %arg0, %c0_i32 : i32, i32
  }
}

module attributes {stable_mosaic.version = 11 : i64} {
  func.func @_ln_ffn_residual_kernel(%arg0: i32, %arg1: memref<8x32xbf16, #tpu.memory_space<vmem>>, %arg2: memref<1x32xf32, #tpu.memory_space<vmem>>, %arg3: memref<1x32xf32, #tpu.memory_space<vmem>>, %arg4: memref<32x64xbf16, #tpu.memory_space<vmem>>, %arg5: memref<1x64xf32, #tpu.memory_space<vmem>>, %arg6: memref<64x32xbf16, #tpu.memory_space<vmem>>, %arg7: memref<1x32xf32, #tpu.memory_space<vmem>>, %arg8: memref<8x32xbf16, #tpu.memory_space<vmem>>) attributes {dimension_semantics = [#tpu.dimension_semantics<parallel>], iteration_bounds = array<i64: 2>, scalar_prefetch = 0 : i64, scratch_operands = 0 : i64, tpu.core_type = #tpu.core_type<tc>, window_params = [{transform_indices = @transform_0, window_bounds = array<i64: 8, 32>}, {pipeline_mode = #tpu.pipeline_mode<synchronous>, transform_indices = @transform_1, window_bounds = array<i64: 1, 32>}, {pipeline_mode = #tpu.pipeline_mode<synchronous>, transform_indices = @transform_2, window_bounds = array<i64: 1, 32>}, {pipeline_mode = #tpu.pipeline_mode<synchronous>, transform_indices = @transform_3, window_bounds = array<i64: 32, 64>}, {pipeline_mode = #tpu.pipeline_mode<synchronous>, transform_indices = @transform_4, window_bounds = array<i64: 1, 64>}, {pipeline_mode = #tpu.pipeline_mode<synchronous>, transform_indices = @transform_5, window_bounds = array<i64: 64, 32>}, {pipeline_mode = #tpu.pipeline_mode<synchronous>, transform_indices = @transform_6, window_bounds = array<i64: 1, 32>}, {transform_indices = @transform_7, window_bounds = array<i64: 8, 32>}]} {
    %c0 = arith.constant 0 : index
    %c0_0 = arith.constant 0 : index
    %0 = vector.load %arg1[%c0, %c0_0] : memref<8x32xbf16, #tpu.memory_space<vmem>>, vector<8x32xbf16>
    %1 = arith.extf %0 : vector<8x32xbf16> to vector<8x32xf32>
    %c0_1 = arith.constant 0 : index
    %c0_2 = arith.constant 0 : index
    %2 = vector.load %arg2[%c0_1, %c0_2] : memref<1x32xf32, #tpu.memory_space<vmem>>, vector<1x32xf32>
    %c0_3 = arith.constant 0 : index
    %c0_4 = arith.constant 0 : index
    %3 = vector.load %arg3[%c0_3, %c0_4] : memref<1x32xf32, #tpu.memory_space<vmem>>, vector<1x32xf32>
    %cst = arith.constant dense<0.000000e+00> : vector<8xf32>
    %4 = vector.multi_reduction <add>, %1, %cst [1] : vector<8x32xf32> to vector<8xf32>
    %5 = vector.shape_cast %4 : vector<8xf32> to vector<8x1xf32>
    %cst_5 = arith.constant 3.200000e+01 : f32
    %6 = vector.broadcast %cst_5 : f32 to vector<8x1xf32>
    %7 = arith.divf %5, %6 : vector<8x1xf32>
    %8 = vector.broadcast %7 : vector<8x1xf32> to vector<8x32xf32>
    %9 = arith.subf %1, %8 : vector<8x32xf32>
    %10 = arith.mulf %9, %9 : vector<8x32xf32>
    %cst_6 = arith.constant dense<0.000000e+00> : vector<8xf32>
    %11 = vector.multi_reduction <add>, %10, %cst_6 [1] : vector<8x32xf32> to vector<8xf32>
    %12 = vector.shape_cast %11 : vector<8xf32> to vector<8x1xf32>
    %cst_7 = arith.constant 3.200000e+01 : f32
    %13 = vector.broadcast %cst_7 : f32 to vector<8x1xf32>
    %14 = arith.divf %12, %13 : vector<8x1xf32>
    %15 = vector.broadcast %7 : vector<8x1xf32> to vector<8x32xf32>
    %16 = arith.subf %1, %15 : vector<8x32xf32>
    %cst_8 = arith.constant 9.99999974E-6 : f32
    %17 = vector.broadcast %cst_8 : f32 to vector<8x1xf32>
    %18 = arith.addf %14, %17 : vector<8x1xf32>
    %19 = math.rsqrt %18 : vector<8x1xf32>
    %20 = vector.broadcast %19 : vector<8x1xf32> to vector<8x32xf32>
    %21 = arith.mulf %16, %20 : vector<8x32xf32>
    %22 = vector.broadcast %2 : vector<1x32xf32> to vector<8x32xf32>
    %23 = arith.mulf %21, %22 : vector<8x32xf32>
    %24 = vector.broadcast %3 : vector<1x32xf32> to vector<8x32xf32>
    %25 = arith.addf %23, %24 : vector<8x32xf32>
    %26 = arith.truncf %25 : vector<8x32xf32> to vector<8x32xbf16>
    %c0_9 = arith.constant 0 : index
    %c0_10 = arith.constant 0 : index
    %27 = vector.load %arg4[%c0_9, %c0_10] : memref<32x64xbf16, #tpu.memory_space<vmem>>, vector<32x64xbf16>
    %cst_11 = arith.constant dense<0.000000e+00> : vector<8x64xf32>
    %28 = tpu.matmul %26, %27, %cst_11 {dimension_numbers = #tpu.dot_dimension_numbers<[1], [0], [0], [1], [0, 0, 1, 1], [], []>} : vector<8x32xbf16>, vector<32x64xbf16>, vector<8x64xf32> -> vector<8x64xf32>
    %c0_12 = arith.constant 0 : index
    %c0_13 = arith.constant 0 : index
    %29 = vector.load %arg5[%c0_12, %c0_13] : memref<1x64xf32, #tpu.memory_space<vmem>>, vector<1x64xf32>
    %30 = vector.broadcast %29 : vector<1x64xf32> to vector<8x64xf32>
    %31 = arith.addf %28, %30 : vector<8x64xf32>
    %cst_14 = arith.constant 0.000000e+00 : f32
    %32 = vector.broadcast %cst_14 : f32 to vector<8x64xf32>
    %33 = arith.maximumf %31, %32 : vector<8x64xf32>
    %34 = arith.truncf %33 : vector<8x64xf32> to vector<8x64xbf16>
    %c0_15 = arith.constant 0 : index
    %c0_16 = arith.constant 0 : index
    %35 = vector.load %arg6[%c0_15, %c0_16] : memref<64x32xbf16, #tpu.memory_space<vmem>>, vector<64x32xbf16>
    %cst_17 = arith.constant dense<0.000000e+00> : vector<8x32xf32>
    %36 = tpu.matmul %34, %35, %cst_17 {dimension_numbers = #tpu.dot_dimension_numbers<[1], [0], [0], [1], [0, 0, 1, 1], [], []>} : vector<8x64xbf16>, vector<64x32xbf16>, vector<8x32xf32> -> vector<8x32xf32>
    %c0_18 = arith.constant 0 : index
    %c0_19 = arith.constant 0 : index
    %37 = vector.load %arg7[%c0_18, %c0_19] : memref<1x32xf32, #tpu.memory_space<vmem>>, vector<1x32xf32>
    %38 = vector.broadcast %37 : vector<1x32xf32> to vector<8x32xf32>
    %39 = arith.addf %36, %38 : vector<8x32xf32>
    %40 = arith.addf %1, %39 : vector<8x32xf32>
    %41 = arith.truncf %40 : vector<8x32xf32> to vector<8x32xbf16>
    %c0_20 = arith.constant 0 : index
    %c0_21 = arith.constant 0 : index
    %42 = vector.load %arg8[%c0_20, %c0_21] : memref<8x32xbf16, #tpu.memory_space<vmem>>, vector<8x32xbf16>
    tpu.vector_store %arg8[%c0_20, %c0_21], %41 {strides = array<i32>} : memref<8x32xbf16, #tpu.memory_space<vmem>>, vector<8x32xbf16>,
    return
  }
  func.func @transform_0(%arg0: i32) -> (i32, i32) {
    %c0_i32 = arith.constant 0 : i32
    %c0_i32_0 = arith.constant 0 : i32
    return %arg0, %c0_i32 : i32, i32
  }
  func.func @transform_1(%arg0: i32) -> (i32, i32) {
    %c0_i32 = arith.constant 0 : i32
    %c0_i32_0 = arith.constant 0 : i32
    %c0_i32_1 = arith.constant 0 : i32
    return %c0_i32, %c0_i32_0 : i32, i32
  }
  func.func @transform_2(%arg0: i32) -> (i32, i32) {
    %c0_i32 = arith.constant 0 : i32
    %c0_i32_0 = arith.constant 0 : i32
    %c0_i32_1 = arith.constant 0 : i32
    return %c0_i32, %c0_i32_0 : i32, i32
  }
  func.func @transform_3(%arg0: i32) -> (i32, i32) {
    %c0_i32 = arith.constant 0 : i32
    %c0_i32_0 = arith.constant 0 : i32
    %c0_i32_1 = arith.constant 0 : i32
    return %c0_i32, %c0_i32_0 : i32, i32
  }
  func.func @transform_4(%arg0: i32) -> (i32, i32) {
    %c0_i32 = arith.constant 0 : i32
    %c0_i32_0 = arith.constant 0 : i32
    %c0_i32_1 = arith.constant 0 : i32
    return %c0_i32, %c0_i32_0 : i32, i32
  }
  func.func @transform_5(%arg0: i32) -> (i32, i32) {
    %c0_i32 = arith.constant 0 : i32
    %c0_i32_0 = arith.constant 0 : i32
    %c0_i32_1 = arith.constant 0 : i32
    return %c0_i32, %c0_i32_0 : i32, i32
  }
  func.func @transform_6(%arg0: i32) -> (i32, i32) {
    %c0_i32 = arith.constant 0 : i32
    %c0_i32_0 = arith.constant 0 : i32
    %c0_i32_1 = arith.constant 0 : i32
    return %c0_i32, %c0_i32_0 : i32, i32
  }
  func.func @transform_7(%arg0: i32) -> (i32, i32) {
    %c0_i32 = arith.constant 0 : i32
    %c0_i32_0 = arith.constant 0 : i32
    return %arg0, %c0_i32 : i32, i32
  }
}

module attributes {stable_mosaic.version = 11 : i64} {
  func.func @_layernorm_kernel(%arg0: i32, %arg1: memref<8x32xbf16, #tpu.memory_space<vmem>>, %arg2: memref<1x32xf32, #tpu.memory_space<vmem>>, %arg3: memref<1x32xf32, #tpu.memory_space<vmem>>, %arg4: memref<8x32xf32, #tpu.memory_space<vmem>>) attributes {dimension_semantics = [#tpu.dimension_semantics<parallel>], iteration_bounds = array<i64: 2>, scalar_prefetch = 0 : i64, scratch_operands = 0 : i64, tpu.core_type = #tpu.core_type<tc>, window_params = [{transform_indices = @transform_0, window_bounds = array<i64: 8, 32>}, {pipeline_mode = #tpu.pipeline_mode<synchronous>, transform_indices = @transform_1, window_bounds = array<i64: 1, 32>}, {pipeline_mode = #tpu.pipeline_mode<synchronous>, transform_indices = @transform_2, window_bounds = array<i64: 1, 32>}, {transform_indices = @transform_3, window_bounds = array<i64: 8, 32>}]} {
    %c0 = arith.constant 0 : index
    %c0_0 = arith.constant 0 : index
    %0 = vector.load %arg1[%c0, %c0_0] : memref<8x32xbf16, #tpu.memory_space<vmem>>, vector<8x32xbf16>
    %1 = arith.extf %0 : vector<8x32xbf16> to vector<8x32xf32>
    %c0_1 = arith.constant 0 : index
    %c0_2 = arith.constant 0 : index
    %2 = vector.load %arg2[%c0_1, %c0_2] : memref<1x32xf32, #tpu.memory_space<vmem>>, vector<1x32xf32>
    %c0_3 = arith.constant 0 : index
    %c0_4 = arith.constant 0 : index
    %3 = vector.load %arg3[%c0_3, %c0_4] : memref<1x32xf32, #tpu.memory_space<vmem>>, vector<1x32xf32>
    %cst = arith.constant dense<0.000000e+00> : vector<8xf32>
    %4 = vector.multi_reduction <add>, %1, %cst [1] : vector<8x32xf32> to vector<8xf32>
    %5 = vector.shape_cast %4 : vector<8xf32> to vector<8x1xf32>
    %cst_5 = arith.constant 3.200000e+01 : f32
    %6 = vector.broadcast %cst_5 : f32 to vector<8x1xf32>
    %7 = arith.divf %5, %6 : vector<8x1xf32>
    %8 = vector.broadcast %7 : vector<8x1xf32> to vector<8x32xf32>
    %9 = arith.subf %1, %8 : vector<8x32xf32>
    %10 = arith.mulf %9, %9 : vector<8x32xf32>
    %cst_6 = arith.constant dense<0.000000e+00> : vector<8xf32>
    %11 = vector.multi_reduction <add>, %10, %cst_6 [1] : vector<8x32xf32> to vector<8xf32>
    %12 = vector.shape_cast %11 : vector<8xf32> to vector<8x1xf32>
    %cst_7 = arith.constant 3.200000e+01 : f32
    %13 = vector.broadcast %cst_7 : f32 to vector<8x1xf32>
    %14 = arith.divf %12, %13 : vector<8x1xf32>
    %15 = vector.broadcast %7 : vector<8x1xf32> to vector<8x32xf32>
    %16 = arith.subf %1, %15 : vector<8x32xf32>
    %cst_8 = arith.constant 9.99999974E-6 : f32
    %17 = vector.broadcast %cst_8 : f32 to vector<8x1xf32>
    %18 = arith.addf %14, %17 : vector<8x1xf32>
    %19 = math.rsqrt %18 : vector<8x1xf32>
    %20 = vector.broadcast %19 : vector<8x1xf32> to vector<8x32xf32>
    %21 = arith.mulf %16, %20 : vector<8x32xf32>
    %22 = vector.broadcast %2 : vector<1x32xf32> to vector<8x32xf32>
    %23 = arith.mulf %21, %22 : vector<8x32xf32>
    %24 = vector.broadcast %3 : vector<1x32xf32> to vector<8x32xf32>
    %25 = arith.addf %23, %24 : vector<8x32xf32>
    %c0_9 = arith.constant 0 : index
    %c0_10 = arith.constant 0 : index
    %26 = vector.load %arg4[%c0_9, %c0_10] : memref<8x32xf32, #tpu.memory_space<vmem>>, vector<8x32xf32>
    tpu.vector_store %arg4[%c0_9, %c0_10], %25 {strides = array<i32>} : memref<8x32xf32, #tpu.memory_space<vmem>>, vector<8x32xf32>,
    return
  }
  func.func @transform_0(%arg0: i32) -> (i32, i32) {
    %c0_i32 = arith.constant 0 : i32
    %c0_i32_0 = arith.constant 0 : i32
    return %arg0, %c0_i32 : i32, i32
  }
  func.func @transform_1(%arg0: i32) -> (i32, i32) {
    %c0_i32 = arith.constant 0 : i32
    %c0_i32_0 = arith.constant 0 : i32
    %c0_i32_1 = arith.constant 0 : i32
    return %c0_i32, %c0_i32_0 : i32, i32
  }
  func.func @transform_2(%arg0: i32) -> (i32, i32) {
    %c0_i32 = arith.constant 0 : i32
    %c0_i32_0 = arith.constant 0 : i32
    %c0_i32_1 = arith.constant 0 : i32
    return %c0_i32, %c0_i32_0 : i32, i32
  }
  func.func @transform_3(%arg0: i32) -> (i32, i32) {
    %c0_i32 = arith.constant 0 : i32
    %c0_i32_0 = arith.constant 0 : i32
    return %arg0, %c0_i32 : i32, i32
  }
}

</mosaic_0001>

<llo_original>
// kernel: baseline_encoder.8
$region0: #{baseline_encoder.8}
  #allocation0 [shape = 'u32[]', space=smem, size = 0x4, offset = 0x4, fixed_abs, tag = 'smem constant byte address 0x4 - core index']
  #allocation1 [shape = 'u32[144,128]{1,0:T(1,128)}', space=vmem, size = 0x12000, scoped, tag = 'internal scratch']
  %s0 = inlined_call_operand.hbm [shape: bf16[16,32], index: 0, kind: input, shape index: {}]
  %s1 = inlined_call_operand.hbm [shape: f32[1,32], index: 1, kind: input, shape index: {}]
  %s2 = inlined_call_operand.hbm [shape: f32[1,32], index: 2, kind: input, shape index: {}]
  %s3 = inlined_call_operand.hbm [shape: bf16[16,32], index: 3, kind: output, shape index: {}]
  %s4 = sld [smem:[#allocation0]]
  $region57: #{baseline_encoder.8} parent=0
    _
  %s6 = ssub.s32 1, %s4
  %s7 = scalar_select 0, %s6, %s4
  $region1: #{baseline_encoder.8} parent=0
    #allocation2 [shape = 'u8[4096]{0}', space=vmem, size = 0x1000, scoped, tag = 'input window, operand 0']
    #allocation3 [shape = 's32[2]{0}', space=sflag, size = 0x8, scoped, tag = 'scoped memory for baseline_encoder.8']
    #allocation4 [shape = 's32[2]{0}', space=sflag, size = 0x8, scoped, tag = 'scoped memory for baseline_encoder.8']
    #allocation5 [shape = 'u8[512]{0}', space=vmem, size = 0x400, scoped, tag = 'input window, operand 1, single buffered']
    #allocation6 [shape = 's32[1]{0}', space=sflag, size = 0x4, scoped, tag = 'scoped memory for baseline_encoder.8']
    #allocation7 [shape = 'u8[512]{0}', space=vmem, size = 0x400, scoped, tag = 'input window, operand 2, single buffered']
    #allocation8 [shape = 'u8[4096]{0}', space=vmem, size = 0x1000, scoped, tag = 'output window, operand 0']
    %8 = vsyncpa [#allocation3], 0
    %s9 = scalar_lea.sflag [#allocation3], 1
    %10 = vsyncpa %s9, 0
    %11 = vsyncpa [#allocation6], 0
    %12 = vsyncpa [#allocation4], 0
    %s13 = scalar_lea.sflag [#allocation4], 1
    %14 = vsyncpa %s13, 0
    loop: start=0, step=1, limit=4
    $region2: #{baseline_encoder.8} parent=1 // loop_pre_header
      _
    $region3: #{baseline_encoder.8} parent=1 // loop_header
      %s16 = sphi 0, %s20
      %p17 = scmp.ge.s32.totalorder %s16, 4
      %s26 = sphi 0, %s28
      %s29 = sphi 0, %s26
      %s30 = sphi 0, %s29
      %s46 = sphi 0, %s30
      %s50 = sphi 0, %s50
      %s52 = sphi 0, %s50
      %s53 = sphi 0, %s52
      %s67 = sphi 0, %s53
      %s71 = sphi 0, %s71
      %s73 = sphi 0, %s71
      %s74 = sphi 0, %s73
      %s88 = sphi 0, %s74
      %s94 = sphi 0, %s96
      %s97 = sphi 0, %s94
      %s98 = sphi 0, %s97
      %s114 = sphi 0, %s98
    $region4: #{baseline_encoder.8} parent=1 // loop_header_branch
      %19 = sbr.rel (%p17) target = $region8
    $region5: #{baseline_encoder.8} parent=1 // loop_body
      %s21 = ssub.s32 %s16, 1
      %s22 = ssub.s32 %s16, 2
      %s23 = sadd.s32 %s16, 1
      %s24 = ssub.s32 %s16, %s23
      %p25 = scmp.eq.s32.totalorder %s24, 0
      %s27 = sadd.s32 %s26, 1
      %s28 = scalar_select %p25, %s26, %s27
      %p31 = pneg %p25
      %p32 = scmp.eq.s32.totalorder %s16, 1
      %p33 = por %p31, %p32
      %p34 = scmp.ne.s32.totalorder %s26, %s29
      %p35 = scmp.eq.s32.totalorder %s16, 0
      %p36 = por %p34, %p35
      %p37 = scmp.ne.s32.totalorder %s26, %s29
      %p38 = scmp.eq.s32.totalorder %s21, 1
      %p39 = por %p37, %p38
      %p40 = scmp.ne.s32.totalorder %s29, %s30
      %p41 = scmp.eq.s32.totalorder %s21, 0
      %p42 = por %p40, %p41
      %p43 = scmp.ne.s32.totalorder %s29, %s30
      %p44 = scmp.eq.s32.totalorder %s22, 1
      %p45 = por %p43, %p44
      %p47 = scmp.ne.s32.totalorder %s30, %s46
      %p48 = scmp.eq.s32.totalorder %s22, 0
      %p49 = por %p47, %p48
      %s51 = sadd.s32 %s50, 1
      %p54 = scmp.eq.s32.totalorder %s16, 1
      %p55 = scmp.ne.s32.totalorder %s50, %s52
      %p56 = scmp.eq.s32.totalorder %s16, 0
      %p57 = por %p55, %p56
      %p58 = scmp.ne.s32.totalorder %s50, %s52
      %p59 = scmp.eq.s32.totalorder %s21, 1
      %p60 = por %p58, %p59
      %p61 = scmp.ne.s32.totalorder %s52, %s53
      %p62 = scmp.eq.s32.totalorder %s21, 0
      %p63 = por %p61, %p62
      %p64 = scmp.ne.s32.totalorder %s52, %s53
      %p65 = scmp.eq.s32.totalorder %s22, 1
      %p66 = por %p64, %p65
      %p68 = scmp.ne.s32.totalorder %s53, %s67
      %p69 = scmp.eq.s32.totalorder %s22, 0
      %p70 = por %p68, %p69
      %s72 = sadd.s32 %s71, 1
      %p75 = scmp.eq.s32.totalorder %s16, 1
      %p76 = scmp.ne.s32.totalorder %s71, %s73
      %p77 = scmp.eq.s32.totalorder %s16, 0
      %p78 = por %p76, %p77
      %p79 = scmp.ne.s32.totalorder %s71, %s73
      %p80 = scmp.eq.s32.totalorder %s21, 1
      %p81 = por %p79, %p80
      %p82 = scmp.ne.s32.totalorder %s73, %s74
      %p83 = scmp.eq.s32.totalorder %s21, 0
      %p84 = por %p82, %p83
      %p85 = scmp.ne.s32.totalorder %s73, %s74
      %p86 = scmp.eq.s32.totalorder %s22, 1
      %p87 = por %p85, %p86
      %p89 = scmp.ne.s32.totalorder %s74, %s88
      %p90 = scmp.eq.s32.totalorder %s22, 0
      %p91 = por %p89, %p90
      %s92 = ssub.s32 %s16, %s23
      %p93 = scmp.eq.s32.totalorder %s92, 0
      %s95 = sadd.s32 %s94, 1
      %s96 = scalar_select %p93, %s94, %s95
      %p99 = pneg %p93
      %p100 = scmp.eq.s32.totalorder %s16, 1
      %p101 = por %p99, %p100
      %p102 = scmp.ne.s32.totalorder %s94, %s97
      %p103 = scmp.eq.s32.totalorder %s16, 0
      %p104 = por %p102, %p103
      %p105 = scmp.ne.s32.totalorder %s94, %s97
      %p106 = scmp.eq.s32.totalorder %s21, 1
      %p107 = por %p105, %p106
      %p108 = scmp.ne.s32.totalorder %s97, %s98
      %p109 = scmp.eq.s32.totalorder %s21, 0
      %p110 = por %p108, %p109
      %p111 = scmp.ne.s32.totalorder %s97, %s98
      %p112 = scmp.eq.s32.totalorder %s22, 1
      %p113 = por %p111, %p112
      %p115 = scmp.ne.s32.totalorder %s98, %s114
      %p116 = scmp.eq.s32.totalorder %s22, 0
      %p117 = por %p115, %p116
      %p118 = scmp.le.s32.totalorder 1, %s16
      %p119 = scmp.lt.s32.totalorder %s16, 3
      %p120 = pnand %p118, %p119
      %p121 = pneg %p120
      // Predicated region
      $region9: #{baseline_encoder.8} parent=5 // pred_check
        _
      $region10: #{baseline_encoder.8} parent=5 // pred_check_branch
        %123 = sbr.rel (%p120) target = $region12
      $region11: #{baseline_encoder.8} parent=5 // pred_region
        %s124 = ssub.s32 %s16, 1
        // Predicated region
        $region13: #{baseline_encoder.8} parent=11 // pred_check
          %p125 = pneg %p63
        $region14: #{baseline_encoder.8} parent=11 // pred_check_branch
          %127 = sbr.rel (%p125) target = $region16
        $region15: #{baseline_encoder.8} parent=11 // pred_region
          %s129 = ssub.s32 16, 16
          %130 = vsyncadd [#allocation6], %s129
          %s132 = sshll.u32 [#allocation5], 4
          %s133 = int_to_ptr.vmem [resolvable:$true] %s132
          %135 = dma.hbm_to_vmem [thread:$0]  %s1, 16, %s133, [#allocation6]
        $region16: #{baseline_encoder.8} parent=11 // pred_fallthru
          _
        // Predicated region
        $region17: #{baseline_encoder.8} parent=11 // pred_check
          %p136 = pneg %p84
        $region18: #{baseline_encoder.8} parent=11 // pred_check_branch
          %138 = sbr.rel (%p136) target = $region20
        $region19: #{baseline_encoder.8} parent=11 // pred_region
          %s140 = ssub.s32 16, 16
          %141 = vsyncadd [#allocation6], %s140
          %s143 = sshll.u32 [#allocation7], 4
          %s144 = int_to_ptr.vmem [resolvable:$true] %s143
          %146 = dma.hbm_to_vmem [thread:$0]  %s2, 16, %s144, [#allocation6]
        $region20: #{baseline_encoder.8} parent=11 // pred_fallthru
          _
      $region12: #{baseline_encoder.8} parent=5 // pred_fallthru
        _
      %p147 = scmp.lt.s32.totalorder %s16, 2
      // Predicated region
      $region21: #{baseline_encoder.8} parent=5 // pred_check
        %p148 = pneg %p147
      $region22: #{baseline_encoder.8} parent=5 // pred_check_branch
        %150 = sbr.rel (%p148) target = $region24
      $region23: #{baseline_encoder.8} parent=5 // pred_region
        // Predicated region
        $region25: #{baseline_encoder.8} parent=23 // pred_check
          %p151 = pneg %p36
        $region26: #{baseline_encoder.8} parent=23 // pred_check_branch
          %153 = sbr.rel (%p151) target = $region28
        $region27: #{baseline_encoder.8} parent=23 // pred_region
          %s154 = sand.u32 %s26, 1
          %s155 = scalar_lea.sflag [#allocation3], %s154
          %s156 = sand.u32 %s26, 1
          %s157 = smul.addr %s156, 4
          %s158 = scalar_lea.vmem [#allocation2], %s157
          %s160 = ssub.s32 64, 64
          %161 = vsyncadd %s155, %s160
          %s162 = smul.addr %s16, 64
          %s163 = scalar_lea.hbm %s0, %s162
          %s165 = sshll.u32 %s158, 4
          %s166 = int_to_ptr.vmem [resolvable:$true] %s165
          %168 = dma.hbm_to_vmem [thread:$0]  %s163, 64, %s166, %s155
        $region28: #{baseline_encoder.8} parent=23 // pred_fallthru
          _
      $region24: #{baseline_encoder.8} parent=5 // pred_fallthru
        _
      %p169 = scmp.le.s32.totalorder 1, %s16
      %p170 = scmp.lt.s32.totalorder %s16, 3
      %p171 = pnand %p169, %p170
      %p172 = pneg %p171
      // Predicated region
      $region29: #{baseline_encoder.8} parent=5 // pred_check
        _
      $region30: #{baseline_encoder.8} parent=5 // pred_check_branch
        %174 = sbr.rel (%p171) target = $region32
      $region31: #{baseline_encoder.8} parent=5 // pred_region
        %s175 = ssub.s32 %s16, 1
        %s176 = sand.u32 %s29, 1
        %s177 = scalar_lea.sflag [#allocation3], %s176
        %s178 = sand.u32 %s29, 1
        %s179 = smul.addr %s178, 4
        %s180 = scalar_lea.vmem [#allocation2], %s179
        // Predicated region
        $region33: #{baseline_encoder.8} parent=31 // pred_check
          %p181 = pneg %p42
        $region34: #{baseline_encoder.8} parent=31 // pred_check_branch
          %183 = sbr.rel (%p181) target = $region36
        $region35: #{baseline_encoder.8} parent=31 // pred_region
          %184 = dma.done %s177, 64
        $region36: #{baseline_encoder.8} parent=31 // pred_fallthru
          _
        // Predicated region
        $region37: #{baseline_encoder.8} parent=31 // pred_check
          %p185 = pneg %p63
        $region38: #{baseline_encoder.8} parent=31 // pred_check_branch
          %187 = sbr.rel (%p185) target = $region40
        $region39: #{baseline_encoder.8} parent=31 // pred_region
          %188 = dma.done [#allocation6], 16
        $region40: #{baseline_encoder.8} parent=31 // pred_fallthru
          _
        // Predicated region
        $region41: #{baseline_encoder.8} parent=31 // pred_check
          %p189 = pneg %p84
        $region42: #{baseline_encoder.8} parent=31 // pred_check_branch
          %191 = sbr.rel (%p189) target = $region44
        $region43: #{baseline_encoder.8} parent=31 // pred_region
          %192 = dma.done [#allocation6], 16
        $region44: #{baseline_encoder.8} parent=31 // pred_fallthru
          _
        %s193 = sand.u32 %s29, 1
        %s194 = scalar_lea.sflag [#allocation3], %s193
        %s195 = sand.u32 %s29, 1
        %s196 = smul.addr %s195, 4
        %s197 = scalar_lea.vmem [#allocation2], %s196
        %p198 = pneg %p42
        %p199 = pneg %p39
        %p200 = pneg %p63
        %p201 = pneg %p60
        %p202 = pneg %p84
        %p203 = pneg %p81
        %p204 = pneg %p110
        %p205 = pneg %p107
        %s206 = sand.u32 %s97, 1
        %s207 = scalar_lea.sflag [#allocation4], %s206
        %s208 = sand.u32 %s97, 1
        %s209 = smul.addr %s208, 4
        %s210 = scalar_lea.vmem [#allocation8], %s209
        %v211 = vld [vmem:[%s180] sm:$0xf]
        %v212 = vunpack.c.l.bf16 %v211
        %v213 = vld [vmem:[#allocation5] sm:$0x1]
        %v214 = vld [vmem:[#allocation7] sm:$0x1]
        %vm215 = vcmask 261120
        %v216 = vsel %vm215, %v212, 0.0
        %217 = vadd.xlane.f32.xlu0 %v216
        %v218 = vpop.xlane.xlu0 %217
        %v219 = vrcp.pop 32.0
        %v220 = vmul.f32 %v218, %v219
        %v221 = vsub.f32 %v212, %v220
        %v222 = vmul.f32 %v221, %v221
        %v223 = vsel %vm215, %v222, 0.0
        %224 = vadd.xlane.f32.xlu0 %v223
        %v225 = vpop.xlane.xlu0 %224
        %v226 = vmul.f32 %v225, %v219
        %v227 = vadd.f32 %v226, 1e-05
        %v228 = vrsqrt.pop %v227
        %v229 = vmul.f32 %v221, %v228
        %v231 = vlaneseq
        %v232 = vshrl.u32 %v231, 7
        %v233 = vsub.s32 0, %v232
        %v234 = vrot.slane %v213, %v233
        %v236 = vmul.f32 %v229, %v234
        %v238 = vlaneseq
        %v239 = vshrl.u32 %v238, 7
        %v240 = vsub.s32 0, %v239
        %v241 = vrot.slane %v214, %v240
        %v243 = vadd.f32 %v236, %v241
        %v244 = vpack.c.bf16 %v243, %v243
        %vm245 = vcmask 257024
        %246 = vst.msk [vmem:[%s210] sm:$0xf] %vm245, %v244
        %s247 = sand.u32 %s97, 1
        %s248 = scalar_lea.sflag [#allocation4], %s247
        %s249 = sand.u32 %s97, 1
        %s250 = smul.addr %s249, 4
        %s251 = scalar_lea.vmem [#allocation8], %s250
        // Predicated region
        $region45: #{baseline_encoder.8} parent=31 // pred_check
          %p252 = pneg %p107
        $region46: #{baseline_encoder.8} parent=31 // pred_check_branch
          %254 = sbr.rel (%p252) target = $region48
        $region47: #{baseline_encoder.8} parent=31 // pred_region
          %s256 = ssub.s32 64, 64
          %257 = vsyncadd %s248, %s256
          %s258 = smul.addr %s21, 64
          %s259 = scalar_lea.hbm %s3, %s258
          %s261 = sshll.u32 %s251, 4
          %s262 = int_to_ptr.vmem [resolvable:$true] %s261
          %264 = dma.vmem_to_hbm [thread:$0]  %s262, 64, %s259, %s248
        $region48: #{baseline_encoder.8} parent=31 // pred_fallthru
          _
      $region32: #{baseline_encoder.8} parent=5 // pred_fallthru
        _
      %p265 = scmp.le.s32.totalorder 2, %s16
      // Predicated region
      $region49: #{baseline_encoder.8} parent=5 // pred_check
        %p266 = pneg %p265
      $region50: #{baseline_encoder.8} parent=5 // pred_check_branch
        %268 = sbr.rel (%p266) target = $region52
      $region51: #{baseline_encoder.8} parent=5 // pred_region
        %s269 = ssub.s32 %s16, 2
        // Predicated region
        $region53: #{baseline_encoder.8} parent=51 // pred_check
          %p270 = pneg %p113
        $region54: #{baseline_encoder.8} parent=51 // pred_check_branch
          %272 = sbr.rel (%p270) target = $region56
        $region55: #{baseline_encoder.8} parent=51 // pred_region
          %s273 = sand.u32 %s98, 1
          %s274 = scalar_lea.sflag [#allocation4], %s273
          %s275 = sand.u32 %s98, 1
          %s276 = smul.addr %s275, 4
          %s277 = scalar_lea.vmem [#allocation8], %s276
          %278 = dma.done %s274, 64
        $region56: #{baseline_encoder.8} parent=51 // pred_fallthru
          _
      $region52: #{baseline_encoder.8} parent=5 // pred_fallthru
        _
    $region6: #{baseline_encoder.8} parent=1 // loop_footer
      %s20 = sadd.s32 1, %s16
    $region7: #{baseline_encoder.8} parent=1 // loop_footer_branch
      %15 = sbr.rel target = $region3
    $region8: #{baseline_encoder.8} parent=1 // loop_exit
      _
    %279 = vsyncpa [#allocation3], 1
    %s280 = scalar_lea.sflag [#allocation3], 1
    %281 = vsyncpa %s280, 1
    %282 = vsyncpa [#allocation6], 1
    %283 = vsyncpa [#allocation4], 1
    %s284 = scalar_lea.sflag [#allocation4], 1
    %285 = vsyncpa %s284, 1

// kernel: baseline_encoder.6
$region0: #{baseline_encoder.6}
  #allocation0 [shape = 'u32[]', space=smem, size = 0x4, offset = 0x4, fixed_abs, tag = 'smem constant byte address 0x4 - core index']
  #allocation1 [shape = 'u32[144,128]{1,0:T(1,128)}', space=vmem, size = 0x12000, scoped, tag = 'internal scratch']
  #allocation2 [shape = 'bf16[8,32]{1,0:T(8,128)(2,1)}', space=vmem, size = 0x800, scoped, tag = 'scratch operand']
  #allocation3 [shape = 'f32[8,32]{1,0:T(8,128)}', space=vmem, size = 0x1000, scoped, tag = 'scratch operand']
  %s0 = inlined_call_operand.hbm [shape: bf16[2,8,32], index: 0, kind: input, shape index: {}]
  %s1 = inlined_call_operand.hbm [shape: f32[1,32], index: 1, kind: input, shape index: {}]
  %s2 = inlined_call_operand.hbm [shape: f32[1,32], index: 2, kind: input, shape index: {}]
  %s3 = inlined_call_operand.hbm [shape: bf16[4,32,24], index: 3, kind: input, shape index: {}]
  %s4 = inlined_call_operand.hbm [shape: f32[4,1,24], index: 4, kind: input, shape index: {}]
  %s5 = inlined_call_operand.hbm [shape: f32[2,1,8], index: 5, kind: input, shape index: {}]
  %s6 = inlined_call_operand.hbm [shape: bf16[4,8,32], index: 6, kind: input, shape index: {}]
  %s7 = inlined_call_operand.hbm [shape: f32[1,32], index: 7, kind: input, shape index: {}]
  %s8 = inlined_call_operand.hbm [shape: bf16[2,8,32], index: 8, kind: output, shape index: {}]
  %s9 = sld [smem:[#allocation0]]
  $region105: #{baseline_encoder.6} parent=0
    _
  %s11 = ssub.s32 1, %s9
  %s12 = scalar_select 0, %s11, %s9
  $region1: #{baseline_encoder.6} parent=0
    #allocation4 [shape = 'u8[4096]{0}', space=vmem, size = 0x1000, scoped, tag = 'input window, operand 0']
    #allocation5 [shape = 's32[2]{0}', space=sflag, size = 0x8, scoped, tag = 'scoped memory for baseline_encoder.6']
    #allocation6 [shape = 's32[2]{0}', space=sflag, size = 0x8, scoped, tag = 'scoped memory for baseline_encoder.6']
    #allocation7 [shape = 'u8[512]{0}', space=vmem, size = 0x400, scoped, tag = 'input window, operand 1, single buffered']
    #allocation8 [shape = 's32[1]{0}', space=sflag, size = 0x4, scoped, tag = 'scoped memory for baseline_encoder.6']
    #allocation9 [shape = 'u8[512]{0}', space=vmem, size = 0x400, scoped, tag = 'input window, operand 2, single buffered']
    #allocation10 [shape = 'u8[16384]{0}', space=vmem, size = 0x4000, scoped, tag = 'input window, operand 3']
    #allocation11 [shape = 's32[2]{0}', space=sflag, size = 0x8, scoped, tag = 'scoped memory for baseline_encoder.6']
    #allocation12 [shape = 'u8[1024]{0}', space=vmem, size = 0x400, scoped, tag = 'input window, operand 4']
    #allocation13 [shape = 'u8[1024]{0}', space=vmem, size = 0x400, scoped, tag = 'input window, operand 5']
    #allocation14 [shape = 's32[2]{0}', space=sflag, size = 0x8, scoped, tag = 'scoped memory for baseline_encoder.6']
    #allocation15 [shape = 'u8[4096]{0}', space=vmem, size = 0x1000, scoped, tag = 'input window, operand 6']
    #allocation16 [shape = 'u8[512]{0}', space=vmem, size = 0x400, scoped, tag = 'input window, operand 7, single buffered']
    #allocation17 [shape = 's32[1]{0}', space=sflag, size = 0x4, scoped, tag = 'scoped memory for baseline_encoder.6']
    #allocation18 [shape = 'u8[4096]{0}', space=vmem, size = 0x1000, scoped, tag = 'output window, operand 0']
    %13 = vsyncpa [#allocation5], 0
    %s14 = scalar_lea.sflag [#allocation5], 1
    %15 = vsyncpa %s14, 0
    %16 = vsyncpa [#allocation8], 0
    %17 = vsyncpa [#allocation11], 0
    %s18 = scalar_lea.sflag [#allocation11], 1
    %19 = vsyncpa %s18, 0
    %20 = vsyncpa [#allocation14], 0
    %s21 = scalar_lea.sflag [#allocation14], 1
    %22 = vsyncpa %s21, 0
    %23 = vsyncpa [#allocation17], 0
    %24 = vsyncpa [#allocation6], 0
    %s25 = scalar_lea.sflag [#allocation6], 1
    %26 = vsyncpa %s25, 0
    loop: start=0, step=1, limit=10
    $region2: #{baseline_encoder.6} parent=1 // loop_pre_header
      _
    $region3: #{baseline_encoder.6} parent=1 // loop_header
      %s28 = sphi 0, %s32
      %p29 = scmp.ge.s32.totalorder %s28, 10
      %s35 = sphi 0, %s47
      %s36 = sphi 0, %s43
      %s37 = sphi 0, %s35
      %s38 = sphi 0, %s36
      %s39 = sphi 0, %s37
      %s40 = sphi 0, %s38
      %s50 = sphi 0, %s52
      %s53 = sphi 0, %s50
      %s54 = sphi 0, %s53
      %s70 = sphi 0, %s54
      %s74 = sphi 0, %s74
      %s76 = sphi 0, %s74
      %s77 = sphi 0, %s76
      %s91 = sphi 0, %s77
      %s95 = sphi 0, %s95
      %s97 = sphi 0, %s95
      %s98 = sphi 0, %s97
      %s112 = sphi 0, %s98
      %s118 = sphi 0, %s120
      %s121 = sphi 0, %s118
      %s122 = sphi 0, %s121
      %s138 = sphi 0, %s122
      %s144 = sphi 0, %s146
      %s147 = sphi 0, %s144
      %s148 = sphi 0, %s147
      %s164 = sphi 0, %s148
      %s170 = sphi 0, %s172
      %s173 = sphi 0, %s170
      %s174 = sphi 0, %s173
      %s190 = sphi 0, %s174
      %s196 = sphi 0, %s198
      %s199 = sphi 0, %s196
      %s200 = sphi 0, %s199
      %s216 = sphi 0, %s200
      %s220 = sphi 0, %s220
      %s222 = sphi 0, %s220
      %s223 = sphi 0, %s222
      %s237 = sphi 0, %s223
      %s243 = sphi 0, %s245
      %s246 = sphi 0, %s243
      %s247 = sphi 0, %s246
      %s263 = sphi 0, %s247
    $region4: #{baseline_encoder.6} parent=1 // loop_header_branch
      %31 = sbr.rel (%p29) target = $region8
    $region5: #{baseline_encoder.6} parent=1 // loop_body
      %s33 = ssub.s32 %s28, 1
      %s34 = ssub.s32 %s28, 2
      %s41 = sadd.s32 1, %s36
      %p42 = scmp.ge.s32.totalorder %s41, 4
      %s43 = scalar_select %p42, 0, %s41
      %s44 = sadd.s32 1, %s35
      %s45 = scalar_select %p42, %s44, %s35
      %p46 = scmp.ge.s32.totalorder %s45, 2
      %s47 = scalar_select %p46, 0, %s45
      %s48 = ssub.s32 %s35, %s47
      %p49 = scmp.eq.s32.totalorder %s48, 0
      %s51 = sadd.s32 %s50, 1
      %s52 = scalar_select %p49, %s50, %s51
      %p55 = pneg %p49
      %p56 = scmp.eq.s32.totalorder %s28, 7
      %p57 = por %p55, %p56
      %p58 = scmp.ne.s32.totalorder %s50, %s53
      %p59 = scmp.eq.s32.totalorder %s28, 0
      %p60 = por %p58, %p59
      %p61 = scmp.ne.s32.totalorder %s50, %s53
      %p62 = scmp.eq.s32.totalorder %s33, 7
      %p63 = por %p61, %p62
      %p64 = scmp.ne.s32.totalorder %s53, %s54
      %p65 = scmp.eq.s32.totalorder %s33, 0
      %p66 = por %p64, %p65
      %p67 = scmp.ne.s32.totalorder %s53, %s54
      %p68 = scmp.eq.s32.totalorder %s34, 7
      %p69 = por %p67, %p68
      %p71 = scmp.ne.s32.totalorder %s54, %s70
      %p72 = scmp.eq.s32.totalorder %s34, 0
      %p73 = por %p71, %p72
      %s75 = sadd.s32 %s74, 1
      %p78 = scmp.eq.s32.totalorder %s28, 7
      %p79 = scmp.ne.s32.totalorder %s74, %s76
      %p80 = scmp.eq.s32.totalorder %s28, 0
      %p81 = por %p79, %p80
      %p82 = scmp.ne.s32.totalorder %s74, %s76
      %p83 = scmp.eq.s32.totalorder %s33, 7
      %p84 = por %p82, %p83
      %p85 = scmp.ne.s32.totalorder %s76, %s77
      %p86 = scmp.eq.s32.totalorder %s33, 0
      %p87 = por %p85, %p86
      %p88 = scmp.ne.s32.totalorder %s76, %s77
      %p89 = scmp.eq.s32.totalorder %s34, 7
      %p90 = por %p88, %p89
      %p92 = scmp.ne.s32.totalorder %s77, %s91
      %p93 = scmp.eq.s32.totalorder %s34, 0
      %p94 = por %p92, %p93
      %s96 = sadd.s32 %s95, 1
      %p99 = scmp.eq.s32.totalorder %s28, 7
      %p100 = scmp.ne.s32.totalorder %s95, %s97
      %p101 = scmp.eq.s32.totalorder %s28, 0
      %p102 = por %p100, %p101
      %p103 = scmp.ne.s32.totalorder %s95, %s97
      %p104 = scmp.eq.s32.totalorder %s33, 7
      %p105 = por %p103, %p104
      %p106 = scmp.ne.s32.totalorder %s97, %s98
      %p107 = scmp.eq.s32.totalorder %s33, 0
      %p108 = por %p106, %p107
      %p109 = scmp.ne.s32.totalorder %s97, %s98
      %p110 = scmp.eq.s32.totalorder %s34, 7
      %p111 = por %p109, %p110
      %p113 = scmp.ne.s32.totalorder %s98, %s112
      %p114 = scmp.eq.s32.totalorder %s34, 0
      %p115 = por %p113, %p114
      %s116 = ssub.s32 %s36, %s43
      %p117 = scmp.eq.s32.totalorder %s116, 0
      %s119 = sadd.s32 %s118, 1
      %s120 = scalar_select %p117, %s118, %s119
      %p123 = pneg %p117
      %p124 = scmp.eq.s32.totalorder %s28, 7
      %p125 = por %p123, %p124
      %p126 = scmp.ne.s32.totalorder %s118, %s121
      %p127 = scmp.eq.s32.totalorder %s28, 0
      %p128 = por %p126, %p127
      %p129 = scmp.ne.s32.totalorder %s118, %s121
      %p130 = scmp.eq.s32.totalorder %s33, 7
      %p131 = por %p129, %p130
      %p132 = scmp.ne.s32.totalorder %s121, %s122
      %p133 = scmp.eq.s32.totalorder %s33, 0
      %p134 = por %p132, %p133
      %p135 = scmp.ne.s32.totalorder %s121, %s122
      %p136 = scmp.eq.s32.totalorder %s34, 7
      %p137 = por %p135, %p136
      %p139 = scmp.ne.s32.totalorder %s122, %s138
      %p140 = scmp.eq.s32.totalorder %s34, 0
      %p141 = por %p139, %p140
      %s142 = ssub.s32 %s36, %s43
      %p143 = scmp.eq.s32.totalorder %s142, 0
      %s145 = sadd.s32 %s144, 1
      %s146 = scalar_select %p143, %s144, %s145
      %p149 = pneg %p143
      %p150 = scmp.eq.s32.totalorder %s28, 7
      %p151 = por %p149, %p150
      %p152 = scmp.ne.s32.totalorder %s144, %s147
      %p153 = scmp.eq.s32.totalorder %s28, 0
      %p154 = por %p152, %p153
      %p155 = scmp.ne.s32.totalorder %s144, %s147
      %p156 = scmp.eq.s32.totalorder %s33, 7
      %p157 = por %p155, %p156
      %p158 = scmp.ne.s32.totalorder %s147, %s148
      %p159 = scmp.eq.s32.totalorder %s33, 0
      %p160 = por %p158, %p159
      %p161 = scmp.ne.s32.totalorder %s147, %s148
      %p162 = scmp.eq.s32.totalorder %s34, 7
      %p163 = por %p161, %p162
      %p165 = scmp.ne.s32.totalorder %s148, %s164
      %p166 = scmp.eq.s32.totalorder %s34, 0
      %p167 = por %p165, %p166
      %s168 = ssub.s32 %s35, %s47
      %p169 = scmp.eq.s32.totalorder %s168, 0
      %s171 = sadd.s32 %s170, 1
      %s172 = scalar_select %p169, %s170, %s171
      %p175 = pneg %p169
      %p176 = scmp.eq.s32.totalorder %s28, 7
      %p177 = por %p175, %p176
      %p178 = scmp.ne.s32.totalorder %s170, %s173
      %p179 = scmp.eq.s32.totalorder %s28, 0
      %p180 = por %p178, %p179
      %p181 = scmp.ne.s32.totalorder %s170, %s173
      %p182 = scmp.eq.s32.totalorder %s33, 7
      %p183 = por %p181, %p182
      %p184 = scmp.ne.s32.totalorder %s173, %s174
      %p185 = scmp.eq.s32.totalorder %s33, 0
      %p186 = por %p184, %p185
      %p187 = scmp.ne.s32.totalorder %s173, %s174
      %p188 = scmp.eq.s32.totalorder %s34, 7
      %p189 = por %p187, %p188
      %p191 = scmp.ne.s32.totalorder %s174, %s190
      %p192 = scmp.eq.s32.totalorder %s34, 0
      %p193 = por %p191, %p192
      %s194 = ssub.s32 %s36, %s43
      %p195 = scmp.eq.s32.totalorder %s194, 0
      %s197 = sadd.s32 %s196, 1
      %s198 = scalar_select %p195, %s196, %s197
      %p201 = pneg %p195
      %p202 = scmp.eq.s32.totalorder %s28, 7
      %p203 = por %p201, %p202
      %p204 = scmp.ne.s32.totalorder %s196, %s199
      %p205 = scmp.eq.s32.totalorder %s28, 0
      %p206 = por %p204, %p205
      %p207 = scmp.ne.s32.totalorder %s196, %s199
      %p208 = scmp.eq.s32.totalorder %s33, 7
      %p209 = por %p207, %p208
      %p210 = scmp.ne.s32.totalorder %s199, %s200
      %p211 = scmp.eq.s32.totalorder %s33, 0
      %p212 = por %p210, %p211
      %p213 = scmp.ne.s32.totalorder %s199, %s200
      %p214 = scmp.eq.s32.totalorder %s34, 7
      %p215 = por %p213, %p214
      %p217 = scmp.ne.s32.totalorder %s200, %s216
      %p218 = scmp.eq.s32.totalorder %s34, 0
      %p219 = por %p217, %p218
      %s221 = sadd.s32 %s220, 1
      %p224 = scmp.eq.s32.totalorder %s28, 7
      %p225 = scmp.ne.s32.totalorder %s220, %s222
      %p226 = scmp.eq.s32.totalorder %s28, 0
      %p227 = por %p225, %p226
      %p228 = scmp.ne.s32.totalorder %s220, %s222
      %p229 = scmp.eq.s32.totalorder %s33, 7
      %p230 = por %p228, %p229
      %p231 = scmp.ne.s32.totalorder %s222, %s223
      %p232 = scmp.eq.s32.totalorder %s33, 0
      %p233 = por %p231, %p232
      %p234 = scmp.ne.s32.totalorder %s222, %s223
      %p235 = scmp.eq.s32.totalorder %s34, 7
      %p236 = por %p234, %p235
      %p238 = scmp.ne.s32.totalorder %s223, %s237
      %p239 = scmp.eq.s32.totalorder %s34, 0
      %p240 = por %p238, %p239
      %s241 = ssub.s32 %s35, %s47
      %p242 = scmp.eq.s32.totalorder %s241, 0
      %s244 = sadd.s32 %s243, 1
      %s245 = scalar_select %p242, %s243, %s244
      %p248 = pneg %p242
      %p249 = scmp.eq.s32.totalorder %s28, 7
      %p250 = por %p248, %p249
      %p251 = scmp.ne.s32.totalorder %s243, %s246
      %p252 = scmp.eq.s32.totalorder %s28, 0
      %p253 = por %p251, %p252
      %p254 = scmp.ne.s32.totalorder %s243, %s246
      %p255 = scmp.eq.s32.totalorder %s33, 7
      %p256 = por %p254, %p255
      %p257 = scmp.ne.s32.totalorder %s246, %s247
      %p258 = scmp.eq.s32.totalorder %s33, 0
      %p259 = por %p257, %p258
      %p260 = scmp.ne.s32.totalorder %s246, %s247
      %p261 = scmp.eq.s32.totalorder %s34, 7
      %p262 = por %p260, %p261
      %p264 = scmp.ne.s32.totalorder %s247, %s263
      %p265 = scmp.eq.s32.totalorder %s34, 0
      %p266 = por %p264, %p265
      %p267 = scmp.le.s32.totalorder 1, %s28
      %p268 = scmp.lt.s32.totalorder %s28, 9
      %p269 = pnand %p267, %p268
      %p270 = pneg %p269
      // Predicated region
      $region9: #{baseline_encoder.6} parent=5 // pred_check
        _
      $region10: #{baseline_encoder.6} parent=5 // pred_check_branch
        %272 = sbr.rel (%p269) target = $region12
      $region11: #{baseline_encoder.6} parent=5 // pred_region
        %s273 = ssub.s32 %s28, 1
        // Predicated region
        $region13: #{baseline_encoder.6} parent=11 // pred_check
          %p274 = pneg %p87
        $region14: #{baseline_encoder.6} parent=11 // pred_check_branch
          %276 = sbr.rel (%p274) target = $region16
        $region15: #{baseline_encoder.6} parent=11 // pred_region
          %s278 = ssub.s32 16, 16
          %279 = vsyncadd [#allocation8], %s278
          %s281 = sshll.u32 [#allocation7], 4
          %s282 = int_to_ptr.vmem [resolvable:$true] %s281
          %284 = dma.hbm_to_vmem [thread:$0]  %s1, 16, %s282, [#allocation8]
        $region16: #{baseline_encoder.6} parent=11 // pred_fallthru
          _
        // Predicated region
        $region17: #{baseline_encoder.6} parent=11 // pred_check
          %p285 = pneg %p108
        $region18: #{baseline_encoder.6} parent=11 // pred_check_branch
          %287 = sbr.rel (%p285) target = $region20
        $region19: #{baseline_encoder.6} parent=11 // pred_region
          %s289 = ssub.s32 16, 16
          %290 = vsyncadd [#allocation8], %s289
          %s292 = sshll.u32 [#allocation9], 4
          %s293 = int_to_ptr.vmem [resolvable:$true] %s292
          %295 = dma.hbm_to_vmem [thread:$0]  %s2, 16, %s293, [#allocation8]
        $region20: #{baseline_encoder.6} parent=11 // pred_fallthru
          _
        // Predicated region
        $region21: #{baseline_encoder.6} parent=11 // pred_check
          %p296 = pneg %p233
        $region22: #{baseline_encoder.6} parent=11 // pred_check_branch
          %298 = sbr.rel (%p296) target = $region24
        $region23: #{baseline_encoder.6} parent=11 // pred_region
          %s300 = ssub.s32 16, 16
          %301 = vsyncadd [#allocation17], %s300
          %s303 = sshll.u32 [#allocation16], 4
          %s304 = int_to_ptr.vmem [resolvable:$true] %s303
          %306 = dma.hbm_to_vmem [thread:$0]  %s7, 16, %s304, [#allocation17]
        $region24: #{baseline_encoder.6} parent=11 // pred_fallthru
          _
      $region12: #{baseline_encoder.6} parent=5 // pred_fallthru
        _
      %p307 = scmp.lt.s32.totalorder %s28, 8
      // Predicated region
      $region25: #{baseline_encoder.6} parent=5 // pred_check
        %p308 = pneg %p307
      $region26: #{baseline_encoder.6} parent=5 // pred_check_branch
        %310 = sbr.rel (%p308) target = $region28
      $region27: #{baseline_encoder.6} parent=5 // pred_region
        // Predicated region
        $region29: #{baseline_encoder.6} parent=27 // pred_check
          %p311 = pneg %p60
        $region30: #{baseline_encoder.6} parent=27 // pred_check_branch
          %313 = sbr.rel (%p311) target = $region32
        $region31: #{baseline_encoder.6} parent=27 // pred_region
          %s314 = sand.u32 %s50, 1
          %s315 = scalar_lea.sflag [#allocation5], %s314
          %s316 = sand.u32 %s50, 1
          %s317 = smul.addr %s316, 4
          %s318 = scalar_lea.vmem [#allocation4], %s317
          %s320 = ssub.s32 64, 64
          %321 = vsyncadd %s315, %s320
          %s322 = smul.addr %s35, 64
          %s323 = scalar_lea.hbm %s0, %s322
          %s325 = sshll.u32 %s318, 4
          %s326 = int_to_ptr.vmem [resolvable:$true] %s325
          %328 = dma.hbm_to_vmem [thread:$0]  %s323, 64, %s326, %s315
        $region32: #{baseline_encoder.6} parent=27 // pred_fallthru
          _
        // Predicated region
        $region33: #{baseline_encoder.6} parent=27 // pred_check
          %p329 = pneg %p128
        $region34: #{baseline_encoder.6} parent=27 // pred_check_branch
          %331 = sbr.rel (%p329) target = $region36
        $region35: #{baseline_encoder.6} parent=27 // pred_region
          %s332 = sand.u32 %s28, 1
          %s333 = scalar_lea.sflag [#allocation11], %s332
          %s334 = sand.u32 %s118, 1
          %s335 = smul.addr %s334, 16
          %s336 = scalar_lea.vmem [#allocation10], %s335
          %s338 = ssub.s32 256, 256
          %339 = vsyncadd %s333, %s338
          %s340 = smul.addr %s36, 4
          %s341 = smul.addr %s340, 64
          %s342 = scalar_lea.hbm %s3, %s341
          %s343 = sshll.u32 %s336, 4
          %s344 = int_to_ptr.vmem [resolvable:$true] %s343
          %349 = dma.hbm_to_vmem [thread:$0]  %s342, 256, %s344, %s333, 64, 64, 4
        $region36: #{baseline_encoder.6} parent=27 // pred_fallthru
          _
        // Predicated region
        $region37: #{baseline_encoder.6} parent=27 // pred_check
          %p350 = pneg %p154
        $region38: #{baseline_encoder.6} parent=27 // pred_check_branch
          %352 = sbr.rel (%p350) target = $region40
        $region39: #{baseline_encoder.6} parent=27 // pred_region
          %s353 = sand.u32 %s28, 1
          %s354 = scalar_lea.sflag [#allocation11], %s353
          %s355 = sand.u32 %s144, 1
          %s356 = scalar_lea.vmem [#allocation12], %s355
          %s358 = ssub.s32 16, 16
          %359 = vsyncadd %s354, %s358
          %s360 = smul.addr %s36, 16
          %s361 = scalar_lea.hbm %s4, %s360
          %s363 = sshll.u32 %s356, 4
          %s364 = int_to_ptr.vmem [resolvable:$true] %s363
          %366 = dma.hbm_to_vmem [thread:$0]  %s361, 16, %s364, %s354
        $region40: #{baseline_encoder.6} parent=27 // pred_fallthru
          _
        // Predicated region
        $region41: #{baseline_encoder.6} parent=27 // pred_check
          %p367 = pneg %p180
        $region42: #{baseline_encoder.6} parent=27 // pred_check_branch
          %369 = sbr.rel (%p367) target = $region44
        $region43: #{baseline_encoder.6} parent=27 // pred_region
          %s370 = sand.u32 %s28, 1
          %s371 = scalar_lea.sflag [#allocation14], %s370
          %s372 = sand.u32 %s170, 1
          %s373 = scalar_lea.vmem [#allocation13], %s372
          %s375 = ssub.s32 16, 16
          %376 = vsyncadd %s371, %s375
          %s377 = smul.addr %s35, 16
          %s378 = scalar_lea.hbm %s5, %s377
          %s380 = sshll.u32 %s373, 4
          %s381 = int_to_ptr.vmem [resolvable:$true] %s380
          %383 = dma.hbm_to_vmem [thread:$0]  %s378, 16, %s381, %s371
        $region44: #{baseline_encoder.6} parent=27 // pred_fallthru
          _
        // Predicated region
        $region45: #{baseline_encoder.6} parent=27 // pred_check
          %p384 = pneg %p206
        $region46: #{baseline_encoder.6} parent=27 // pred_check_branch
          %386 = sbr.rel (%p384) target = $region48
        $region47: #{baseline_encoder.6} parent=27 // pred_region
          %s387 = sand.u32 %s28, 1
          %s388 = scalar_lea.sflag [#allocation14], %s387
          %s389 = sand.u32 %s196, 1
          %s390 = smul.addr %s389, 4
          %s391 = scalar_lea.vmem [#allocation15], %s390
          %s393 = ssub.s32 64, 64
          %394 = vsyncadd %s388, %s393
          %s395 = smul.addr %s36, 64
          %s396 = scalar_lea.hbm %s6, %s395
          %s398 = sshll.u32 %s391, 4
          %s399 = int_to_ptr.vmem [resolvable:$true] %s398
          %401 = dma.hbm_to_vmem [thread:$0]  %s396, 64, %s399, %s388
        $region48: #{baseline_encoder.6} parent=27 // pred_fallthru
          _
      $region28: #{baseline_encoder.6} parent=5 // pred_fallthru
        _
      %p402 = scmp.le.s32.totalorder 1, %s28
      %p403 = scmp.lt.s32.totalorder %s28, 9
      %p404 = pnand %p402, %p403
      %p405 = pneg %p404
      // Predicated region
      $region49: #{baseline_encoder.6} parent=5 // pred_check
        _
      $region50: #{baseline_encoder.6} parent=5 // pred_check_branch
        %407 = sbr.rel (%p404) target = $region52
      $region51: #{baseline_encoder.6} parent=5 // pred_region
        %s408 = ssub.s32 %s28, 1
        %s409 = sand.u32 %s53, 1
        %s410 = scalar_lea.sflag [#allocation5], %s409
        %s411 = sand.u32 %s53, 1
        %s412 = smul.addr %s411, 4
        %s413 = scalar_lea.vmem [#allocation4], %s412
        // Predicated region
        $region53: #{baseline_encoder.6} parent=51 // pred_check
          %p414 = pneg %p66
        $region54: #{baseline_encoder.6} parent=51 // pred_check_branch
          %416 = sbr.rel (%p414) target = $region56
        $region55: #{baseline_encoder.6} parent=51 // pred_region
          %417 = dma.done %s410, 64
        $region56: #{baseline_encoder.6} parent=51 // pred_fallthru
          _
        // Predicated region
        $region57: #{baseline_encoder.6} parent=51 // pred_check
          %p418 = pneg %p87
        $region58: #{baseline_encoder.6} parent=51 // pred_check_branch
          %420 = sbr.rel (%p418) target = $region60
        $region59: #{baseline_encoder.6} parent=51 // pred_region
          %421 = dma.done [#allocation8], 16
        $region60: #{baseline_encoder.6} parent=51 // pred_fallthru
          _
        // Predicated region
        $region61: #{baseline_encoder.6} parent=51 // pred_check
          %p422 = pneg %p108
        $region62: #{baseline_encoder.6} parent=51 // pred_check_branch
          %424 = sbr.rel (%p422) target = $region64
        $region63: #{baseline_encoder.6} parent=51 // pred_region
          %425 = dma.done [#allocation8], 16
        $region64: #{baseline_encoder.6} parent=51 // pred_fallthru
          _
        %s426 = sand.u32 %s33, 1
        %s427 = scalar_lea.sflag [#allocation11], %s426
        %s428 = sand.u32 %s121, 1
        %s429 = smul.addr %s428, 16
        %s430 = scalar_lea.vmem [#allocation10], %s429
        // Predicated region
        $region65: #{baseline_encoder.6} parent=51 // pred_check
          %p431 = pneg %p134
        $region66: #{baseline_encoder.6} parent=51 // pred_check_branch
          %433 = sbr.rel (%p431) target = $region68
        $region67: #{baseline_encoder.6} parent=51 // pred_region
          %434 = dma.done %s427, 256
        $region68: #{baseline_encoder.6} parent=51 // pred_fallthru
          _
        %s435 = sand.u32 %s33, 1
        %s436 = scalar_lea.sflag [#allocation11], %s435
        %s437 = sand.u32 %s147, 1
        %s438 = scalar_lea.vmem [#allocation12], %s437
        // Predicated region
        $region69: #{baseline_encoder.6} parent=51 // pred_check
          %p439 = pneg %p160
        $region70: #{baseline_encoder.6} parent=51 // pred_check_branch
          %441 = sbr.rel (%p439) target = $region72
        $region71: #{baseline_encoder.6} parent=51 // pred_region
          %442 = dma.done %s436, 16
        $region72: #{baseline_encoder.6} parent=51 // pred_fallthru
          _
        %s443 = sand.u32 %s33, 1
        %s444 = scalar_lea.sflag [#allocation14], %s443
        %s445 = sand.u32 %s173, 1
        %s446 = scalar_lea.vmem [#allocation13], %s445
        // Predicated region
        $region73: #{baseline_encoder.6} parent=51 // pred_check
          %p447 = pneg %p186
        $region74: #{baseline_encoder.6} parent=51 // pred_check_branch
          %449 = sbr.rel (%p447) target = $region76
        $region75: #{baseline_encoder.6} parent=51 // pred_region
          %450 = dma.done %s444, 16
        $region76: #{baseline_encoder.6} parent=51 // pred_fallthru
          _
        %s451 = sand.u32 %s33, 1
        %s452 = scalar_lea.sflag [#allocation14], %s451
        %s453 = sand.u32 %s199, 1
        %s454 = smul.addr %s453, 4
        %s455 = scalar_lea.vmem [#allocation15], %s454
        // Predicated region
        $region77: #{baseline_encoder.6} parent=51 // pred_check
          %p456 = pneg %p212
        $region78: #{baseline_encoder.6} parent=51 // pred_check_branch
          %458 = sbr.rel (%p456) target = $region80
        $region79: #{baseline_encoder.6} parent=51 // pred_region
          %459 = dma.done %s452, 64
        $region80: #{baseline_encoder.6} parent=51 // pred_fallthru
          _
        // Predicated region
        $region81: #{baseline_encoder.6} parent=51 // pred_check
          %p460 = pneg %p233
        $region82: #{baseline_encoder.6} parent=51 // pred_check_branch
          %462 = sbr.rel (%p460) target = $region84
        $region83: #{baseline_encoder.6} parent=51 // pred_region
          %463 = dma.done [#allocation17], 16
        $region84: #{baseline_encoder.6} parent=51 // pred_fallthru
          _
        %s464 = sand.u32 %s53, 1
        %s465 = scalar_lea.sflag [#allocation5], %s464
        %s466 = sand.u32 %s53, 1
        %s467 = smul.addr %s466, 4
        %s468 = scalar_lea.vmem [#allocation4], %s467
        %p469 = pneg %p66
        %p470 = pneg %p63
        %p471 = pneg %p87
        %p472 = pneg %p84
        %p473 = pneg %p108
        %p474 = pneg %p105
        %s475 = sand.u32 %s33, 1
        %s476 = scalar_lea.sflag [#allocation11], %s475
        %s477 = sand.u32 %s121, 1
        %s478 = smul.addr %s477, 16
        %s479 = scalar_lea.vmem [#allocation10], %s478
        %p480 = pneg %p134
        %p481 = pneg %p131
        %s482 = sand.u32 %s33, 1
        %s483 = scalar_lea.sflag [#allocation11], %s482
        %s484 = sand.u32 %s147, 1
        %s485 = scalar_lea.vmem [#allocation12], %s484
        %p486 = pneg %p160
        %p487 = pneg %p157
        %s488 = sand.u32 %s33, 1
        %s489 = scalar_lea.sflag [#allocation14], %s488
        %s490 = sand.u32 %s173, 1
        %s491 = scalar_lea.vmem [#allocation13], %s490
        %p492 = pneg %p186
        %p493 = pneg %p183
        %s494 = sand.u32 %s33, 1
        %s495 = scalar_lea.sflag [#allocation14], %s494
        %s496 = sand.u32 %s199, 1
        %s497 = smul.addr %s496, 4
        %s498 = scalar_lea.vmem [#allocation15], %s497
        %p499 = pneg %p212
        %p500 = pneg %p209
        %p501 = pneg %p233
        %p502 = pneg %p230
        %p503 = pneg %p259
        %p504 = pneg %p256
        %s505 = sand.u32 %s246, 1
        %s506 = scalar_lea.sflag [#allocation6], %s505
        %s507 = sand.u32 %s246, 1
        %s508 = smul.addr %s507, 4
        %s509 = scalar_lea.vmem [#allocation18], %s508
        %p511 = scmp.eq.s32.totalorder %s38, 0
        // Predicated region
        $region85: #{baseline_encoder.6} parent=51 // pred_check
          %p512 = pneg %p511
        $region86: #{baseline_encoder.6} parent=51 // pred_check_branch
          %514 = sbr.rel (%p512) target = $region88
        $region87: #{baseline_encoder.6} parent=51 // pred_region
          %v515 = vld [vmem:[%s413] sm:$0xf]
          %v516 = vunpack.c.l.bf16 %v515
          %v517 = vld [vmem:[#allocation7] sm:$0x1]
          %v518 = vld [vmem:[#allocation9] sm:$0x1]
          %vm519 = vcmask 261120
          %v520 = vsel %vm519, %v516, 0.0
          %521 = vadd.xlane.f32.xlu0 %v520
          %v522 = vpop.xlane.xlu0 %521
          %v523 = vrcp.pop 32.0
          %v524 = vmul.f32 %v522, %v523
          %v525 = vsub.f32 %v516, %v524
          %v526 = vmul.f32 %v525, %v525
          %v527 = vsel %vm519, %v526, 0.0
          %528 = vadd.xlane.f32.xlu0 %v527
          %v529 = vpop.xlane.xlu0 %528
          %v530 = vmul.f32 %v529, %v523
          %v531 = vadd.f32 %v530, 1e-05
          %v532 = vrsqrt.pop %v531
          %v533 = vmul.f32 %v525, %v532
          %v535 = vlaneseq
          %v536 = vshrl.u32 %v535, 7
          %v537 = vsub.s32 0, %v536
          %v538 = vrot.slane %v517, %v537
          %v540 = vmul.f32 %v533, %v538
          %v542 = vlaneseq
          %v543 = vshrl.u32 %v542, 7
          %v544 = vsub.s32 0, %v543
          %v545 = vrot.slane %v518, %v544
          %v547 = vadd.f32 %v540, %v545
          %v548 = vpack.c.bf16 %v547, %v547
          %vm549 = vcmask 257024
          %550 = vst.msk [vmem:[#allocation2] sm:$0xf] %vm549, %v548
          %v551 = vld [vmem:[#allocation16] sm:$0x1]
          %v553 = vlaneseq
          %v554 = vshrl.u32 %v553, 7
          %v555 = vsub.s32 0, %v554
          %v556 = vrot.slane %v551, %v555
          %v558 = vadd.f32 %v516, %v556
          %559 = vst.msk [vmem:[#allocation3] sm:$0xff] %vm519, %v558
        $region88: #{baseline_encoder.6} parent=51 // pred_fallthru
          _
        %v560 = vld [vmem:[#allocation2] sm:$0xf]
        %v561 = vld [vmem:[%s430] sm:$0xf]
        %v562 = vld [vmem:[%s430 + $0x4] sm:$0xf]
        %v563 = vld [vmem:[%s430 + $0x8] sm:$0xf]
        %v564 = vld [vmem:[%s430 + $0xc] sm:$0xf]
        %v565 = vld [vmem:[%s438] sm:$0x1]
        %v567 = vlaneseq
        %v568 = vshrl.u32 %v567, 7
        %v569 = vsub.s32 0, %v568
        %v570 = vrot.slane %v565, %v569
        %v576 = vunpack.c.l.b16 %v561
        %v577 = vunpack.c.l.b16 %v562
        %v578 = vunpack.c.l.b16 %v563
        %v579 = vunpack.c.l.b16 %v564
        %v580 = vpack.c.b16 %v577, %v576
        %v581 = vpack.c.b16 %v579, %v578
        %vm584 = vcmask 261120
        %v586 = vsel %vm584, %v560, 0
        %588 = vmatprep.subr.bf16.mxu0 0
        %589 = vmatpush1.bf16.msra.mxu0 %v580
        %590 = vmatprep.subr.bf16.mxu0 0
        %591 = vmatpush1.bf16.msra.mxu0 %v581
        %592 = vmatprep.subr.bf16.mxu0 0
        %593 = vmatpush1.bf16.msra.mxu0 0
        %594 = vmatprep.subr.bf16.mxu0 0
        %595 = vmatpush1.bf16.msra.mxu0 0
        %596 = vmatprep.subr.bf16.mxu0 0
        %597 = vmatpush1.bf16.msra.mxu0 0
        %598 = vmatprep.subr.bf16.mxu0 0
        %599 = vmatpush1.bf16.msra.mxu0 0
        %600 = vmatprep.subr.bf16.mxu0 0
        %601 = vmatpush1.bf16.msra.mxu0 0
        %602 = vmatprep.subr.bf16.mxu0 0
        %603 = vmatpush1.bf16.msra.mxu0 0
        %604 = vmatprep.subr.bf16.mxu0 0
        %605 = vmatpush1.bf16.msra.mxu0 0
        %606 = vmatprep.subr.bf16.mxu0 0
        %607 = vmatpush1.bf16.msra.mxu0 0
        %608 = vmatprep.subr.bf16.mxu0 0
        %609 = vmatpush1.bf16.msra.mxu0 0
        %610 = vmatprep.subr.bf16.mxu0 0
        %611 = vmatpush1.bf16.msra.mxu0 0
        %612 = vmatprep.subr.bf16.mxu0 0
        %613 = vmatpush1.bf16.msra.mxu0 0
        %614 = vmatprep.subr.bf16.mxu0 0
        %615 = vmatpush1.bf16.msra.mxu0 0
        %616 = vmatprep.subr.bf16.mxu0 0
        %617 = vmatpush1.bf16.msra.mxu0 0
        %618 = vmatprep.subr.bf16.mxu0 0
        %619 = vmatpush1.bf16.msra.mxu0 0
        %620 = vmatprep.mubr.bf16.mxu0 0
        %621 = vmatmul.mubr.bf16.gmra.mrb[0].mxu0 %v586
        %v622 = vpop.f32.mrb[0].mxu0
        %v623 = vadd.f32 %v570, %v622
        %v624 = vpop.f32.mrb[0].mxu0
        %v625 = vpop.f32.mrb[0].mxu0
        %v626 = vpop.f32.mrb[0].mxu0
        %627 = vdwg.mxu0
        %v628 = vmul.f32 %v623, 0.35355338
        %v629 = vpack.c.bf16 %v628, %v628
        %v630 = vpack.c.bf16 %v623, %v623
        %v631 = vld [vmem:[%s446] sm:$0x1]
        %v633 = vlaneseq
        %v634 = vshrl.u32 %v633, 7
        %v635 = vsub.s32 0, %v634
        %v636 = vrot.slane %v631, %v635
        %639 = vrot.lane.b32.xlu0 %v630, 120
        %v640 = vpop.permute.xlu0 %639
        %vm641 = vcmask 64512
        %v643 = vsel %vm641, %v629, 0
        %v646 = vsel %vm641, %v640, 0
        %648 = vmatprep.subr.bf16.mxu0 0
        %649 = vmatpush1.bf16.xpose.msra.mxu0 %v646
        %650 = vmatprep.subr.bf16.mxu0 0
        %651 = vmatpush1.bf16.xpose.msra.mxu0 0
        %652 = vmatprep.subr.bf16.mxu0 0
        %653 = vmatpush1.bf16.xpose.msra.mxu0 0
        %654 = vmatprep.subr.bf16.mxu0 0
        %655 = vmatpush1.bf16.xpose.msra.mxu0 0
        %656 = vmatprep.subr.bf16.mxu0 0
        %657 = vmatpush1.bf16.xpose.msra.mxu0 0
        %658 = vmatprep.subr.bf16.mxu0 0
        %659 = vmatpush1.bf16.xpose.msra.mxu0 0
        %660 = vmatprep.subr.bf16.mxu0 0
        %661 = vmatpush1.bf16.xpose.msra.mxu0 0
        %662 = vmatprep.subr.bf16.mxu0 0
        %663 = vmatpush1.bf16.xpose.msra.mxu0 0
        %664 = vmatprep.subr.bf16.mxu0 0
        %665 = vmatpush1.bf16.xpose.msra.mxu0 0
        %666 = vmatprep.subr.bf16.mxu0 0
        %667 = vmatpush1.bf16.xpose.msra.mxu0 0
        %668 = vmatprep.subr.bf16.mxu0 0
        %669 = vmatpush1.bf16.xpose.msra.mxu0 0
        %670 = vmatprep.subr.bf16.mxu0 0
        %671 = vmatpush1.bf16.xpose.msra.mxu0 0
        %672 = vmatprep.subr.bf16.mxu0 0
        %673 = vmatpush1.bf16.xpose.msra.mxu0 0
        %674 = vmatprep.subr.bf16.mxu0 0
        %675 = vmatpush1.bf16.xpose.msra.mxu0 0
        %676 = vmatprep.subr.bf16.mxu0 0
        %677 = vmatpush1.bf16.xpose.msra.mxu0 0
        %678 = vmatprep.subr.bf16.mxu0 0
        %679 = vmatpush1.bf16.xpose.msra.mxu0 0
        %680 = vmatprep.mubr.bf16.mxu0 0
        %681 = vmatmul.mubr.bf16.gmra.mrb[0].mxu0 %v643
        %v682 = vpop.f32.mrb[0].mxu0
        %v683 = vadd.f32 %v636, %v682
        %v684 = vpop.f32.mrb[0].mxu0
        %v685 = vpop.f32.mrb[0].mxu0
        %v686 = vpop.f32.mrb[0].mxu0
        %687 = vdwg.mxu0
        %v688 = vsel %vm641, %v683, -inf
        %689 = vmax.xlane.f32.xlu0 %v688
        %v690 = vpop.xlane.xlu0 %689
        %v691 = vsub.f32 %v683, %v690
        %v692 = vmul.f32 %v691, 1.442695
        %v693 = vpow.pop %v692
        %v694 = vsel %vm641, %v693, 0.0
        %695 = vadd.xlane.f32.xlu0 %v694
        %v696 = vpop.xlane.xlu0 %695
        %v697 = vrcp.pop %v696
        %v698 = vmul.f32 %v693, %v697
        %v699 = vpack.c.bf16 %v698, %v698
        %700 = vrot.lane.b32.xlu0 %v630, 112
        %v701 = vpop.permute.xlu0 %700
        %v703 = vsel %vm641, %v699, 0
        %vm705 = vcmask 1043456
        %v707 = vsel %vm705, %v701, 0
        %709 = vmatprep.subr.bf16.mxu0 0
        %710 = vmatpush1.bf16.msra.mxu0 %v707
        %711 = vmatprep.subr.bf16.mxu0 0
        %712 = vmatpush1.bf16.msra.mxu0 0
        %713 = vmatprep.subr.bf16.mxu0 0
        %714 = vmatpush1.bf16.msra.mxu0 0
        %715 = vmatprep.subr.bf16.mxu0 0
        %716 = vmatpush1.bf16.msra.mxu0 0
        %717 = vmatprep.subr.bf16.mxu0 0
        %718 = vmatpush1.bf16.msra.mxu0 0
        %719 = vmatprep.subr.bf16.mxu0 0
        %720 = vmatpush1.bf16.msra.mxu0 0
        %721 = vmatprep.subr.bf16.mxu0 0
        %722 = vmatpush1.bf16.msra.mxu0 0
        %723 = vmatprep.subr.bf16.mxu0 0
        %724 = vmatpush1.bf16.msra.mxu0 0
        %725 = vmatprep.subr.bf16.mxu0 0
        %726 = vmatpush1.bf16.msra.mxu0 0
        %727 = vmatprep.subr.bf16.mxu0 0
        %728 = vmatpush1.bf16.msra.mxu0 0
        %729 = vmatprep.subr.bf16.mxu0 0
        %730 = vmatpush1.bf16.msra.mxu0 0
        %731 = vmatprep.subr.bf16.mxu0 0
        %732 = vmatpush1.bf16.msra.mxu0 0
        %733 = vmatprep.subr.bf16.mxu0 0
        %734 = vmatpush1.bf16.msra.mxu0 0
        %735 = vmatprep.subr.bf16.mxu0 0
        %736 = vmatpush1.bf16.msra.mxu0 0
        %737 = vmatprep.subr.bf16.mxu0 0
        %738 = vmatpush1.bf16.msra.mxu0 0
        %739 = vmatprep.subr.bf16.mxu0 0
        %740 = vmatpush1.bf16.msra.mxu0 0
        %741 = vmatprep.mubr.bf16.mxu0 0
        %742 = vmatmul.mubr.bf16.gmra.mrb[0].mxu0 %v703
        %v743 = vpop.f32.mrb[0].mxu0
        %v744 = vadd.f32 0.0, %v743
        %v745 = vpop.f32.mrb[0].mxu0
        %v746 = vpop.f32.mrb[0].mxu0
        %v747 = vpop.f32.mrb[0].mxu0
        %748 = vdwg.mxu0
        %v749 = vld [vmem:[#allocation3] sm:$0xff]
        %v750 = vpack.c.bf16 %v744, %v744
        %v751 = vld [vmem:[%s455] sm:$0xf]
        %v753 = vsel %vm641, %v750, 0
        %v756 = vsel %vm705, %v751, 0
        %758 = vmatprep.subr.bf16.mxu0 0
        %759 = vmatpush1.bf16.msra.mxu0 %v756
        %760 = vmatprep.subr.bf16.mxu0 0
        %761 = vmatpush1.bf16.msra.mxu0 0
        %762 = vmatprep.subr.bf16.mxu0 0
        %763 = vmatpush1.bf16.msra.mxu0 0
        %764 = vmatprep.subr.bf16.mxu0 0
        %765 = vmatpush1.bf16.msra.mxu0 0
        %766 = vmatprep.subr.bf16.mxu0 0
        %767 = vmatpush1.bf16.msra.mxu0 0
        %768 = vmatprep.subr.bf16.mxu0 0
        %769 = vmatpush1.bf16.msra.mxu0 0
        %770 = vmatprep.subr.bf16.mxu0 0
        %771 = vmatpush1.bf16.msra.mxu0 0
        %772 = vmatprep.subr.bf16.mxu0 0
        %773 = vmatpush1.bf16.msra.mxu0 0
        %774 = vmatprep.subr.bf16.mxu0 0
        %775 = vmatpush1.bf16.msra.mxu0 0
        %776 = vmatprep.subr.bf16.mxu0 0
        %777 = vmatpush1.bf16.msra.mxu0 0
        %778 = vmatprep.subr.bf16.mxu0 0
        %779 = vmatpush1.bf16.msra.mxu0 0
        %780 = vmatprep.subr.bf16.mxu0 0
        %781 = vmatpush1.bf16.msra.mxu0 0
        %782 = vmatprep.subr.bf16.mxu0 0
        %783 = vmatpush1.bf16.msra.mxu0 0
        %784 = vmatprep.subr.bf16.mxu0 0
        %785 = vmatpush1.bf16.msra.mxu0 0
        %786 = vmatprep.subr.bf16.mxu0 0
        %787 = vmatpush1.bf16.msra.mxu0 0
        %788 = vmatprep.subr.bf16.mxu0 0
        %789 = vmatpush1.bf16.msra.mxu0 0
        %790 = vmatprep.mubr.bf16.mxu0 0
        %791 = vmatmul.mubr.bf16.gmra.mrb[0].mxu0 %v753
        %v792 = vpop.f32.mrb[0].mxu0
        %v793 = vadd.f32 0.0, %v792
        %v794 = vpop.f32.mrb[0].mxu0
        %v795 = vpop.f32.mrb[0].mxu0
        %v796 = vpop.f32.mrb[0].mxu0
        %797 = vdwg.mxu0
        %v798 = vadd.f32 %v749, %v793
        %799 = vst.msk [vmem:[#allocation3] sm:$0xff] %vm584, %v798
        %p800 = scmp.eq.s32.totalorder %s38, 3
        // Predicated region
        $region89: #{baseline_encoder.6} parent=51 // pred_check
          %p801 = pneg %p800
        $region90: #{baseline_encoder.6} parent=51 // pred_check_branch
          %803 = sbr.rel (%p801) target = $region92
        $region91: #{baseline_encoder.6} parent=51 // pred_region
          %v804 = vld [vmem:[#allocation3] sm:$0xff]
          %v805 = vpack.c.bf16 %v804, %v804
          %vm806 = vcmask 257024
          %807 = vst.msk [vmem:[%s509] sm:$0xf] %vm806, %v805
        $region92: #{baseline_encoder.6} parent=51 // pred_fallthru
          _
        %s808 = sand.u32 %s246, 1
        %s809 = scalar_lea.sflag [#allocation6], %s808
        %s810 = sand.u32 %s246, 1
        %s811 = smul.addr %s810, 4
        %s812 = scalar_lea.vmem [#allocation18], %s811
        // Predicated region
        $region93: #{baseline_encoder.6} parent=51 // pred_check
          %p813 = pneg %p256
        $region94: #{baseline_encoder.6} parent=51 // pred_check_branch
          %815 = sbr.rel (%p813) target = $region96
        $region95: #{baseline_encoder.6} parent=51 // pred_region
          %s817 = ssub.s32 64, 64
          %818 = vsyncadd %s809, %s817
          %s819 = smul.addr %s37, 64
          %s820 = scalar_lea.hbm %s8, %s819
          %s822 = sshll.u32 %s812, 4
          %s823 = int_to_ptr.vmem [resolvable:$true] %s822
          %825 = dma.vmem_to_hbm [thread:$0]  %s823, 64, %s820, %s809
        $region96: #{baseline_encoder.6} parent=51 // pred_fallthru
          _
      $region52: #{baseline_encoder.6} parent=5 // pred_fallthru
        _
      %p826 = scmp.le.s32.totalorder 2, %s28
      // Predicated region
      $region97: #{baseline_encoder.6} parent=5 // pred_check
        %p827 = pneg %p826
      $region98: #{baseline_encoder.6} parent=5 // pred_check_branch
        %829 = sbr.rel (%p827) target = $region100
      $region99: #{baseline_encoder.6} parent=5 // pred_region
        %s830 = ssub.s32 %s28, 2
        // Predicated region
        $region101: #{baseline_encoder.6} parent=99 // pred_check
          %p831 = pneg %p262
        $region102: #{baseline_encoder.6} parent=99 // pred_check_branch
          %833 = sbr.rel (%p831) target = $region104
        $region103: #{baseline_encoder.6} parent=99 // pred_region
          %s834 = sand.u32 %s247, 1
          %s835 = scalar_lea.sflag [#allocation6], %s834
          %s836 = sand.u32 %s247, 1
          %s837 = smul.addr %s836, 4
          %s838 = scalar_lea.vmem [#allocation18], %s837
          %839 = dma.done %s835, 64
        $region104: #{baseline_encoder.6} parent=99 // pred_fallthru
          _
      $region100: #{baseline_encoder.6} parent=5 // pred_fallthru
        _
    $region6: #{baseline_encoder.6} parent=1 // loop_footer
      %s32 = sadd.s32 1, %s28
    $region7: #{baseline_encoder.6} parent=1 // loop_footer_branch
      %27 = sbr.rel target = $region3
    $region8: #{baseline_encoder.6} parent=1 // loop_exit
      _
    %840 = vsyncpa [#allocation5], 1
    %s841 = scalar_lea.sflag [#allocation5], 1
    %842 = vsyncpa %s841, 1
    %843 = vsyncpa [#allocation8], 1
    %844 = vsyncpa [#allocation11], 1
    %s845 = scalar_lea.sflag [#allocation11], 1
    %846 = vsyncpa %s845, 1
    %847 = vsyncpa [#allocation14], 1
    %s848 = scalar_lea.sflag [#allocation14], 1
    %849 = vsyncpa %s848, 1
    %850 = vsyncpa [#allocation17], 1
    %851 = vsyncpa [#allocation6], 1
    %s852 = scalar_lea.sflag [#allocation6], 1
    %853 = vsyncpa %s852, 1

// kernel: baseline_encoder.7
$region0: #{baseline_encoder.7}
  #allocation0 [shape = 'u32[]', space=smem, size = 0x4, offset = 0x4, fixed_abs, tag = 'smem constant byte address 0x4 - core index']
  #allocation1 [shape = 'u32[144,128]{1,0:T(1,128)}', space=vmem, size = 0x12000, scoped, tag = 'internal scratch']
  %s0 = inlined_call_operand.hbm [shape: bf16[16,32], index: 0, kind: input, shape index: {}]
  %s1 = inlined_call_operand.hbm [shape: f32[1,32], index: 1, kind: input, shape index: {}]
  %s2 = inlined_call_operand.hbm [shape: f32[1,32], index: 2, kind: input, shape index: {}]
  %s3 = inlined_call_operand.hbm [shape: bf16[32,64], index: 3, kind: input, shape index: {}]
  %s4 = inlined_call_operand.hbm [shape: f32[1,64], index: 4, kind: input, shape index: {}]
  %s5 = inlined_call_operand.hbm [shape: bf16[64,32], index: 5, kind: input, shape index: {}]
  %s6 = inlined_call_operand.hbm [shape: f32[1,32], index: 6, kind: input, shape index: {}]
  %s7 = inlined_call_operand.hbm [shape: bf16[16,32], index: 7, kind: output, shape index: {}]
  %s8 = sld [smem:[#allocation0]]
  $region89: #{baseline_encoder.7} parent=0
    _
  %s10 = ssub.s32 1, %s8
  %s11 = scalar_select 0, %s10, %s8
  $region1: #{baseline_encoder.7} parent=0
    #allocation2 [shape = 'u8[4096]{0}', space=vmem, size = 0x1000, scoped, tag = 'input window, operand 0']
    #allocation3 [shape = 's32[2]{0}', space=sflag, size = 0x8, scoped, tag = 'scoped memory for baseline_encoder.7']
    #allocation4 [shape = 's32[2]{0}', space=sflag, size = 0x8, scoped, tag = 'scoped memory for baseline_encoder.7']
    #allocation5 [shape = 'u8[512]{0}', space=vmem, size = 0x400, scoped, tag = 'input window, operand 1, single buffered']
    #allocation6 [shape = 's32[1]{0}', space=sflag, size = 0x4, scoped, tag = 'scoped memory for baseline_encoder.7']
    #allocation7 [shape = 'u8[512]{0}', space=vmem, size = 0x400, scoped, tag = 'input window, operand 2, single buffered']
    #allocation8 [shape = 'u8[8192]{0}', space=vmem, size = 0x2000, scoped, tag = 'input window, operand 3, single buffered']
    #allocation9 [shape = 's32[1]{0}', space=sflag, size = 0x4, scoped, tag = 'scoped memory for baseline_encoder.7']
    #allocation10 [shape = 'u8[512]{0}', space=vmem, size = 0x400, scoped, tag = 'input window, operand 4, single buffered']
    #allocation11 [shape = 'u8[16384]{0}', space=vmem, size = 0x4000, scoped, tag = 'input window, operand 5, single buffered']
    #allocation12 [shape = 's32[1]{0}', space=sflag, size = 0x4, scoped, tag = 'scoped memory for baseline_encoder.7']
    #allocation13 [shape = 'u8[512]{0}', space=vmem, size = 0x400, scoped, tag = 'input window, operand 6, single buffered']
    #allocation14 [shape = 'u8[4096]{0}', space=vmem, size = 0x1000, scoped, tag = 'output window, operand 0']
    %12 = vsyncpa [#allocation3], 0
    %s13 = scalar_lea.sflag [#allocation3], 1
    %14 = vsyncpa %s13, 0
    %15 = vsyncpa [#allocation6], 0
    %16 = vsyncpa [#allocation9], 0
    %17 = vsyncpa [#allocation12], 0
    %18 = vsyncpa [#allocation4], 0
    %s19 = scalar_lea.sflag [#allocation4], 1
    %20 = vsyncpa %s19, 0
    loop: start=0, step=1, limit=4
    $region2: #{baseline_encoder.7} parent=1 // loop_pre_header
      _
    $region3: #{baseline_encoder.7} parent=1 // loop_header
      %s22 = sphi 0, %s26
      %p23 = scmp.ge.s32.totalorder %s22, 4
      %s32 = sphi 0, %s34
      %s35 = sphi 0, %s32
      %s36 = sphi 0, %s35
      %s52 = sphi 0, %s36
      %s56 = sphi 0, %s56
      %s58 = sphi 0, %s56
      %s59 = sphi 0, %s58
      %s73 = sphi 0, %s59
      %s77 = sphi 0, %s77
      %s79 = sphi 0, %s77
      %s80 = sphi 0, %s79
      %s94 = sphi 0, %s80
      %s98 = sphi 0, %s98
      %s100 = sphi 0, %s98
      %s101 = sphi 0, %s100
      %s115 = sphi 0, %s101
      %s119 = sphi 0, %s119
      %s121 = sphi 0, %s119
      %s122 = sphi 0, %s121
      %s136 = sphi 0, %s122
      %s140 = sphi 0, %s140
      %s142 = sphi 0, %s140
      %s143 = sphi 0, %s142
      %s157 = sphi 0, %s143
      %s161 = sphi 0, %s161
      %s163 = sphi 0, %s161
      %s164 = sphi 0, %s163
      %s178 = sphi 0, %s164
      %s184 = sphi 0, %s186
      %s187 = sphi 0, %s184
      %s188 = sphi 0, %s187
      %s204 = sphi 0, %s188
    $region4: #{baseline_encoder.7} parent=1 // loop_header_branch
      %25 = sbr.rel (%p23) target = $region8
    $region5: #{baseline_encoder.7} parent=1 // loop_body
      %s27 = ssub.s32 %s22, 1
      %s28 = ssub.s32 %s22, 2
      %s29 = sadd.s32 %s22, 1
      %s30 = ssub.s32 %s22, %s29
      %p31 = scmp.eq.s32.totalorder %s30, 0
      %s33 = sadd.s32 %s32, 1
      %s34 = scalar_select %p31, %s32, %s33
      %p37 = pneg %p31
      %p38 = scmp.eq.s32.totalorder %s22, 1
      %p39 = por %p37, %p38
      %p40 = scmp.ne.s32.totalorder %s32, %s35
      %p41 = scmp.eq.s32.totalorder %s22, 0
      %p42 = por %p40, %p41
      %p43 = scmp.ne.s32.totalorder %s32, %s35
      %p44 = scmp.eq.s32.totalorder %s27, 1
      %p45 = por %p43, %p44
      %p46 = scmp.ne.s32.totalorder %s35, %s36
      %p47 = scmp.eq.s32.totalorder %s27, 0
      %p48 = por %p46, %p47
      %p49 = scmp.ne.s32.totalorder %s35, %s36
      %p50 = scmp.eq.s32.totalorder %s28, 1
      %p51 = por %p49, %p50
      %p53 = scmp.ne.s32.totalorder %s36, %s52
      %p54 = scmp.eq.s32.totalorder %s28, 0
      %p55 = por %p53, %p54
      %s57 = sadd.s32 %s56, 1
      %p60 = scmp.eq.s32.totalorder %s22, 1
      %p61 = scmp.ne.s32.totalorder %s56, %s58
      %p62 = scmp.eq.s32.totalorder %s22, 0
      %p63 = por %p61, %p62
      %p64 = scmp.ne.s32.totalorder %s56, %s58
      %p65 = scmp.eq.s32.totalorder %s27, 1
      %p66 = por %p64, %p65
      %p67 = scmp.ne.s32.totalorder %s58, %s59
      %p68 = scmp.eq.s32.totalorder %s27, 0
      %p69 = por %p67, %p68
      %p70 = scmp.ne.s32.totalorder %s58, %s59
      %p71 = scmp.eq.s32.totalorder %s28, 1
      %p72 = por %p70, %p71
      %p74 = scmp.ne.s32.totalorder %s59, %s73
      %p75 = scmp.eq.s32.totalorder %s28, 0
      %p76 = por %p74, %p75
      %s78 = sadd.s32 %s77, 1
      %p81 = scmp.eq.s32.totalorder %s22, 1
      %p82 = scmp.ne.s32.totalorder %s77, %s79
      %p83 = scmp.eq.s32.totalorder %s22, 0
      %p84 = por %p82, %p83
      %p85 = scmp.ne.s32.totalorder %s77, %s79
      %p86 = scmp.eq.s32.totalorder %s27, 1
      %p87 = por %p85, %p86
      %p88 = scmp.ne.s32.totalorder %s79, %s80
      %p89 = scmp.eq.s32.totalorder %s27, 0
      %p90 = por %p88, %p89
      %p91 = scmp.ne.s32.totalorder %s79, %s80
      %p92 = scmp.eq.s32.totalorder %s28, 1
      %p93 = por %p91, %p92
      %p95 = scmp.ne.s32.totalorder %s80, %s94
      %p96 = scmp.eq.s32.totalorder %s28, 0
      %p97 = por %p95, %p96
      %s99 = sadd.s32 %s98, 1
      %p102 = scmp.eq.s32.totalorder %s22, 1
      %p103 = scmp.ne.s32.totalorder %s98, %s100
      %p104 = scmp.eq.s32.totalorder %s22, 0
      %p105 = por %p103, %p104
      %p106 = scmp.ne.s32.totalorder %s98, %s100
      %p107 = scmp.eq.s32.totalorder %s27, 1
      %p108 = por %p106, %p107
      %p109 = scmp.ne.s32.totalorder %s100, %s101
      %p110 = scmp.eq.s32.totalorder %s27, 0
      %p111 = por %p109, %p110
      %p112 = scmp.ne.s32.totalorder %s100, %s101
      %p113 = scmp.eq.s32.totalorder %s28, 1
      %p114 = por %p112, %p113
      %p116 = scmp.ne.s32.totalorder %s101, %s115
      %p117 = scmp.eq.s32.totalorder %s28, 0
      %p118 = por %p116, %p117
      %s120 = sadd.s32 %s119, 1
      %p123 = scmp.eq.s32.totalorder %s22, 1
      %p124 = scmp.ne.s32.totalorder %s119, %s121
      %p125 = scmp.eq.s32.totalorder %s22, 0
      %p126 = por %p124, %p125
      %p127 = scmp.ne.s32.totalorder %s119, %s121
      %p128 = scmp.eq.s32.totalorder %s27, 1
      %p129 = por %p127, %p128
      %p130 = scmp.ne.s32.totalorder %s121, %s122
      %p131 = scmp.eq.s32.totalorder %s27, 0
      %p132 = por %p130, %p131
      %p133 = scmp.ne.s32.totalorder %s121, %s122
      %p134 = scmp.eq.s32.totalorder %s28, 1
      %p135 = por %p133, %p134
      %p137 = scmp.ne.s32.totalorder %s122, %s136
      %p138 = scmp.eq.s32.totalorder %s28, 0
      %p139 = por %p137, %p138
      %s141 = sadd.s32 %s140, 1
      %p144 = scmp.eq.s32.totalorder %s22, 1
      %p145 = scmp.ne.s32.totalorder %s140, %s142
      %p146 = scmp.eq.s32.totalorder %s22, 0
      %p147 = por %p145, %p146
      %p148 = scmp.ne.s32.totalorder %s140, %s142
      %p149 = scmp.eq.s32.totalorder %s27, 1
      %p150 = por %p148, %p149
      %p151 = scmp.ne.s32.totalorder %s142, %s143
      %p152 = scmp.eq.s32.totalorder %s27, 0
      %p153 = por %p151, %p152
      %p154 = scmp.ne.s32.totalorder %s142, %s143
      %p155 = scmp.eq.s32.totalorder %s28, 1
      %p156 = por %p154, %p155
      %p158 = scmp.ne.s32.totalorder %s143, %s157
      %p159 = scmp.eq.s32.totalorder %s28, 0
      %p160 = por %p158, %p159
      %s162 = sadd.s32 %s161, 1
      %p165 = scmp.eq.s32.totalorder %s22, 1
      %p166 = scmp.ne.s32.totalorder %s161, %s163
      %p167 = scmp.eq.s32.totalorder %s22, 0
      %p168 = por %p166, %p167
      %p169 = scmp.ne.s32.totalorder %s161, %s163
      %p170 = scmp.eq.s32.totalorder %s27, 1
      %p171 = por %p169, %p170
      %p172 = scmp.ne.s32.totalorder %s163, %s164
      %p173 = scmp.eq.s32.totalorder %s27, 0
      %p174 = por %p172, %p173
      %p175 = scmp.ne.s32.totalorder %s163, %s164
      %p176 = scmp.eq.s32.totalorder %s28, 1
      %p177 = por %p175, %p176
      %p179 = scmp.ne.s32.totalorder %s164, %s178
      %p180 = scmp.eq.s32.totalorder %s28, 0
      %p181 = por %p179, %p180
      %s182 = ssub.s32 %s22, %s29
      %p183 = scmp.eq.s32.totalorder %s182, 0
      %s185 = sadd.s32 %s184, 1
      %s186 = scalar_select %p183, %s184, %s185
      %p189 = pneg %p183
      %p190 = scmp.eq.s32.totalorder %s22, 1
      %p191 = por %p189, %p190
      %p192 = scmp.ne.s32.totalorder %s184, %s187
      %p193 = scmp.eq.s32.totalorder %s22, 0
      %p194 = por %p192, %p193
      %p195 = scmp.ne.s32.totalorder %s184, %s187
      %p196 = scmp.eq.s32.totalorder %s27, 1
      %p197 = por %p195, %p196
      %p198 = scmp.ne.s32.totalorder %s187, %s188
      %p199 = scmp.eq.s32.totalorder %s27, 0
      %p200 = por %p198, %p199
      %p201 = scmp.ne.s32.totalorder %s187, %s188
      %p202 = scmp.eq.s32.totalorder %s28, 1
      %p203 = por %p201, %p202
      %p205 = scmp.ne.s32.totalorder %s188, %s204
      %p206 = scmp.eq.s32.totalorder %s28, 0
      %p207 = por %p205, %p206
      %p208 = scmp.le.s32.totalorder 1, %s22
      %p209 = scmp.lt.s32.totalorder %s22, 3
      %p210 = pnand %p208, %p209
      %p211 = pneg %p210
      // Predicated region
      $region9: #{baseline_encoder.7} parent=5 // pred_check
        _
      $region10: #{baseline_encoder.7} parent=5 // pred_check_branch
        %213 = sbr.rel (%p210) target = $region12
      $region11: #{baseline_encoder.7} parent=5 // pred_region
        %s214 = ssub.s32 %s22, 1
        // Predicated region
        $region13: #{baseline_encoder.7} parent=11 // pred_check
          %p215 = pneg %p69
        $region14: #{baseline_encoder.7} parent=11 // pred_check_branch
          %217 = sbr.rel (%p215) target = $region16
        $region15: #{baseline_encoder.7} parent=11 // pred_region
          %s219 = ssub.s32 16, 16
          %220 = vsyncadd [#allocation6], %s219
          %s222 = sshll.u32 [#allocation5], 4
          %s223 = int_to_ptr.vmem [resolvable:$true] %s222
          %225 = dma.hbm_to_vmem [thread:$0]  %s1, 16, %s223, [#allocation6]
        $region16: #{baseline_encoder.7} parent=11 // pred_fallthru
          _
        // Predicated region
        $region17: #{baseline_encoder.7} parent=11 // pred_check
          %p226 = pneg %p90
        $region18: #{baseline_encoder.7} parent=11 // pred_check_branch
          %228 = sbr.rel (%p226) target = $region20
        $region19: #{baseline_encoder.7} parent=11 // pred_region
          %s230 = ssub.s32 16, 16
          %231 = vsyncadd [#allocation6], %s230
          %s233 = sshll.u32 [#allocation7], 4
          %s234 = int_to_ptr.vmem [resolvable:$true] %s233
          %236 = dma.hbm_to_vmem [thread:$0]  %s2, 16, %s234, [#allocation6]
        $region20: #{baseline_encoder.7} parent=11 // pred_fallthru
          _
        // Predicated region
        $region21: #{baseline_encoder.7} parent=11 // pred_check
          %p237 = pneg %p111
        $region22: #{baseline_encoder.7} parent=11 // pred_check_branch
          %239 = sbr.rel (%p237) target = $region24
        $region23: #{baseline_encoder.7} parent=11 // pred_region
          %s241 = ssub.s32 256, 256
          %242 = vsyncadd [#allocation9], %s241
          %s243 = sshll.u32 [#allocation8], 4
          %s244 = int_to_ptr.vmem [resolvable:$true] %s243
          %249 = dma.hbm_to_vmem [thread:$0]  %s3, 256, %s244, [#allocation9], 64, 64, 4
        $region24: #{baseline_encoder.7} parent=11 // pred_fallthru
          _
        // Predicated region
        $region25: #{baseline_encoder.7} parent=11 // pred_check
          %p250 = pneg %p132
        $region26: #{baseline_encoder.7} parent=11 // pred_check_branch
          %252 = sbr.rel (%p250) target = $region28
        $region27: #{baseline_encoder.7} parent=11 // pred_region
          %s254 = ssub.s32 16, 16
          %255 = vsyncadd [#allocation9], %s254
          %s257 = sshll.u32 [#allocation10], 4
          %s258 = int_to_ptr.vmem [resolvable:$true] %s257
          %260 = dma.hbm_to_vmem [thread:$0]  %s4, 16, %s258, [#allocation9]
        $region28: #{baseline_encoder.7} parent=11 // pred_fallthru
          _
        // Predicated region
        $region29: #{baseline_encoder.7} parent=11 // pred_check
          %p261 = pneg %p153
        $region30: #{baseline_encoder.7} parent=11 // pred_check_branch
          %263 = sbr.rel (%p261) target = $region32
        $region31: #{baseline_encoder.7} parent=11 // pred_region
          %s265 = ssub.s32 512, 512
          %266 = vsyncadd [#allocation12], %s265
          %s267 = sshll.u32 [#allocation11], 4
          %s268 = int_to_ptr.vmem [resolvable:$true] %s267
          %273 = dma.hbm_to_vmem [thread:$0]  %s5, 512, %s268, [#allocation12], 64, 64, 4
        $region32: #{baseline_encoder.7} parent=11 // pred_fallthru
          _
        // Predicated region
        $region33: #{baseline_encoder.7} parent=11 // pred_check
          %p274 = pneg %p174
        $region34: #{baseline_encoder.7} parent=11 // pred_check_branch
          %276 = sbr.rel (%p274) target = $region36
        $region35: #{baseline_encoder.7} parent=11 // pred_region
          %s278 = ssub.s32 16, 16
          %279 = vsyncadd [#allocation12], %s278
          %s281 = sshll.u32 [#allocation13], 4
          %s282 = int_to_ptr.vmem [resolvable:$true] %s281
          %284 = dma.hbm_to_vmem [thread:$0]  %s6, 16, %s282, [#allocation12]
        $region36: #{baseline_encoder.7} parent=11 // pred_fallthru
          _
      $region12: #{baseline_encoder.7} parent=5 // pred_fallthru
        _
      %p285 = scmp.lt.s32.totalorder %s22, 2
      // Predicated region
      $region37: #{baseline_encoder.7} parent=5 // pred_check
        %p286 = pneg %p285
      $region38: #{baseline_encoder.7} parent=5 // pred_check_branch
        %288 = sbr.rel (%p286) target = $region40
      $region39: #{baseline_encoder.7} parent=5 // pred_region
        // Predicated region
        $region41: #{baseline_encoder.7} parent=39 // pred_check
          %p289 = pneg %p42
        $region42: #{baseline_encoder.7} parent=39 // pred_check_branch
          %291 = sbr.rel (%p289) target = $region44
        $region43: #{baseline_encoder.7} parent=39 // pred_region
          %s292 = sand.u32 %s32, 1
          %s293 = scalar_lea.sflag [#allocation3], %s292
          %s294 = sand.u32 %s32, 1
          %s295 = smul.addr %s294, 4
          %s296 = scalar_lea.vmem [#allocation2], %s295
          %s298 = ssub.s32 64, 64
          %299 = vsyncadd %s293, %s298
          %s300 = smul.addr %s22, 64
          %s301 = scalar_lea.hbm %s0, %s300
          %s303 = sshll.u32 %s296, 4
          %s304 = int_to_ptr.vmem [resolvable:$true] %s303
          %306 = dma.hbm_to_vmem [thread:$0]  %s301, 64, %s304, %s293
        $region44: #{baseline_encoder.7} parent=39 // pred_fallthru
          _
      $region40: #{baseline_encoder.7} parent=5 // pred_fallthru
        _
      %p307 = scmp.le.s32.totalorder 1, %s22
      %p308 = scmp.lt.s32.totalorder %s22, 3
      %p309 = pnand %p307, %p308
      %p310 = pneg %p309
      // Predicated region
      $region45: #{baseline_encoder.7} parent=5 // pred_check
        _
      $region46: #{baseline_encoder.7} parent=5 // pred_check_branch
        %312 = sbr.rel (%p309) target = $region48
      $region47: #{baseline_encoder.7} parent=5 // pred_region
        %s313 = ssub.s32 %s22, 1
        %s314 = sand.u32 %s35, 1
        %s315 = scalar_lea.sflag [#allocation3], %s314
        %s316 = sand.u32 %s35, 1
        %s317 = smul.addr %s316, 4
        %s318 = scalar_lea.vmem [#allocation2], %s317
        // Predicated region
        $region49: #{baseline_encoder.7} parent=47 // pred_check
          %p319 = pneg %p48
        $region50: #{baseline_encoder.7} parent=47 // pred_check_branch
          %321 = sbr.rel (%p319) target = $region52
        $region51: #{baseline_encoder.7} parent=47 // pred_region
          %322 = dma.done %s315, 64
        $region52: #{baseline_encoder.7} parent=47 // pred_fallthru
          _
        // Predicated region
        $region53: #{baseline_encoder.7} parent=47 // pred_check
          %p323 = pneg %p69
        $region54: #{baseline_encoder.7} parent=47 // pred_check_branch
          %325 = sbr.rel (%p323) target = $region56
        $region55: #{baseline_encoder.7} parent=47 // pred_region
          %326 = dma.done [#allocation6], 16
        $region56: #{baseline_encoder.7} parent=47 // pred_fallthru
          _
        // Predicated region
        $region57: #{baseline_encoder.7} parent=47 // pred_check
          %p327 = pneg %p90
        $region58: #{baseline_encoder.7} parent=47 // pred_check_branch
          %329 = sbr.rel (%p327) target = $region60
        $region59: #{baseline_encoder.7} parent=47 // pred_region
          %330 = dma.done [#allocation6], 16
        $region60: #{baseline_encoder.7} parent=47 // pred_fallthru
          _
        // Predicated region
        $region61: #{baseline_encoder.7} parent=47 // pred_check
          %p331 = pneg %p111
        $region62: #{baseline_encoder.7} parent=47 // pred_check_branch
          %333 = sbr.rel (%p331) target = $region64
        $region63: #{baseline_encoder.7} parent=47 // pred_region
          %334 = dma.done [#allocation9], 256
        $region64: #{baseline_encoder.7} parent=47 // pred_fallthru
          _
        // Predicated region
        $region65: #{baseline_encoder.7} parent=47 // pred_check
          %p335 = pneg %p132
        $region66: #{baseline_encoder.7} parent=47 // pred_check_branch
          %337 = sbr.rel (%p335) target = $region68
        $region67: #{baseline_encoder.7} parent=47 // pred_region
          %338 = dma.done [#allocation9], 16
        $region68: #{baseline_encoder.7} parent=47 // pred_fallthru
          _
        // Predicated region
        $region69: #{baseline_encoder.7} parent=47 // pred_check
          %p339 = pneg %p153
        $region70: #{baseline_encoder.7} parent=47 // pred_check_branch
          %341 = sbr.rel (%p339) target = $region72
        $region71: #{baseline_encoder.7} parent=47 // pred_region
          %342 = dma.done [#allocation12], 512
        $region72: #{baseline_encoder.7} parent=47 // pred_fallthru
          _
        // Predicated region
        $region73: #{baseline_encoder.7} parent=47 // pred_check
          %p343 = pneg %p174
        $region74: #{baseline_encoder.7} parent=47 // pred_check_branch
          %345 = sbr.rel (%p343) target = $region76
        $region75: #{baseline_encoder.7} parent=47 // pred_region
          %346 = dma.done [#allocation12], 16
        $region76: #{baseline_encoder.7} parent=47 // pred_fallthru
          _
        %s347 = sand.u32 %s35, 1
        %s348 = scalar_lea.sflag [#allocation3], %s347
        %s349 = sand.u32 %s35, 1
        %s350 = smul.addr %s349, 4
        %s351 = scalar_lea.vmem [#allocation2], %s350
        %p352 = pneg %p48
        %p353 = pneg %p45
        %p354 = pneg %p69
        %p355 = pneg %p66
        %p356 = pneg %p90
        %p357 = pneg %p87
        %p358 = pneg %p111
        %p359 = pneg %p108
        %p360 = pneg %p132
        %p361 = pneg %p129
        %p362 = pneg %p153
        %p363 = pneg %p150
        %p364 = pneg %p174
        %p365 = pneg %p171
        %p366 = pneg %p200
        %p367 = pneg %p197
        %s368 = sand.u32 %s187, 1
        %s369 = scalar_lea.sflag [#allocation4], %s368
        %s370 = sand.u32 %s187, 1
        %s371 = smul.addr %s370, 4
        %s372 = scalar_lea.vmem [#allocation14], %s371
        %v374 = vld [vmem:[%s318] sm:$0xf]
        %v375 = vunpack.c.l.bf16 %v374
        %v376 = vld [vmem:[#allocation5] sm:$0x1]
        %v377 = vld [vmem:[#allocation7] sm:$0x1]
        %vm378 = vcmask 261120
        %v379 = vsel %vm378, %v375, 0.0
        %380 = vadd.xlane.f32.xlu0 %v379
        %v381 = vpop.xlane.xlu0 %380
        %v382 = vrcp.pop 32.0
        %v383 = vmul.f32 %v381, %v382
        %v384 = vsub.f32 %v375, %v383
        %v385 = vmul.f32 %v384, %v384
        %v386 = vsel %vm378, %v385, 0.0
        %387 = vadd.xlane.f32.xlu0 %v386
        %v388 = vpop.xlane.xlu0 %387
        %v389 = vmul.f32 %v388, %v382
        %v390 = vadd.f32 %v389, 1e-05
        %v391 = vrsqrt.pop %v390
        %v392 = vmul.f32 %v384, %v391
        %v394 = vlaneseq
        %v395 = vshrl.u32 %v394, 7
        %v396 = vsub.s32 0, %v395
        %v397 = vrot.slane %v376, %v396
        %v399 = vmul.f32 %v392, %v397
        %v401 = vlaneseq
        %v402 = vshrl.u32 %v401, 7
        %v403 = vsub.s32 0, %v402
        %v404 = vrot.slane %v377, %v403
        %v406 = vadd.f32 %v399, %v404
        %v407 = vpack.c.bf16 %v406, %v406
        %v408 = vld [vmem:[#allocation8] sm:$0xf]
        %v409 = vld [vmem:[#allocation8 + $0x4] sm:$0xf]
        %v410 = vld [vmem:[#allocation8 + $0x8] sm:$0xf]
        %v411 = vld [vmem:[#allocation8 + $0xc] sm:$0xf]
        %v412 = vld [vmem:[#allocation10] sm:$0x1]
        %v414 = vlaneseq
        %v415 = vshrl.u32 %v414, 7
        %v416 = vsub.s32 0, %v415
        %v417 = vrot.slane %v412, %v416
        %v423 = vunpack.c.l.b16 %v408
        %v424 = vunpack.c.l.b16 %v409
        %v425 = vunpack.c.l.b16 %v410
        %v426 = vunpack.c.l.b16 %v411
        %v427 = vpack.c.b16 %v424, %v423
        %v428 = vpack.c.b16 %v426, %v425
        %v432 = vsel %vm378, %v407, 0
        %434 = vmatprep.subr.bf16.mxu0 0
        %435 = vmatpush1.bf16.msra.mxu0 %v427
        %436 = vmatprep.subr.bf16.mxu0 0
        %437 = vmatpush1.bf16.msra.mxu0 %v428
        %438 = vmatprep.subr.bf16.mxu0 0
        %439 = vmatpush1.bf16.msra.mxu0 0
        %440 = vmatprep.subr.bf16.mxu0 0
        %441 = vmatpush1.bf16.msra.mxu0 0
        %442 = vmatprep.subr.bf16.mxu0 0
        %443 = vmatpush1.bf16.msra.mxu0 0
        %444 = vmatprep.subr.bf16.mxu0 0
        %445 = vmatpush1.bf16.msra.mxu0 0
        %446 = vmatprep.subr.bf16.mxu0 0
        %447 = vmatpush1.bf16.msra.mxu0 0
        %448 = vmatprep.subr.bf16.mxu0 0
        %449 = vmatpush1.bf16.msra.mxu0 0
        %450 = vmatprep.subr.bf16.mxu0 0
        %451 = vmatpush1.bf16.msra.mxu0 0
        %452 = vmatprep.subr.bf16.mxu0 0
        %453 = vmatpush1.bf16.msra.mxu0 0
        %454 = vmatprep.subr.bf16.mxu0 0
        %455 = vmatpush1.bf16.msra.mxu0 0
        %456 = vmatprep.subr.bf16.mxu0 0
        %457 = vmatpush1.bf16.msra.mxu0 0
        %458 = vmatprep.subr.bf16.mxu0 0
        %459 = vmatpush1.bf16.msra.mxu0 0
        %460 = vmatprep.subr.bf16.mxu0 0
        %461 = vmatpush1.bf16.msra.mxu0 0
        %462 = vmatprep.subr.bf16.mxu0 0
        %463 = vmatpush1.bf16.msra.mxu0 0
        %464 = vmatprep.subr.bf16.mxu0 0
        %465 = vmatpush1.bf16.msra.mxu0 0
        %466 = vmatprep.mubr.bf16.mxu0 0
        %467 = vmatmul.mubr.bf16.gmra.mrb[0].mxu0 %v432
        %v468 = vpop.f32.mrb[0].mxu0
        %v469 = vadd.f32 %v417, %v468
        %v470 = vpop.f32.mrb[0].mxu0
        %v471 = vpop.f32.mrb[0].mxu0
        %v472 = vpop.f32.mrb[0].mxu0
        %473 = vdwg.mxu0
        %v474 = vmax.f32 %v469, 0.0
        %v475 = vpack.c.bf16 %v474, %v474
        %v476 = vld [vmem:[#allocation11] sm:$0xf]
        %v477 = vld [vmem:[#allocation11 + $0x4] sm:$0xf]
        %v478 = vld [vmem:[#allocation11 + $0x8] sm:$0xf]
        %v479 = vld [vmem:[#allocation11 + $0xc] sm:$0xf]
        %v480 = vld [vmem:[#allocation11 + $0x10] sm:$0xf]
        %v481 = vld [vmem:[#allocation11 + $0x14] sm:$0xf]
        %v482 = vld [vmem:[#allocation11 + $0x18] sm:$0xf]
        %v483 = vld [vmem:[#allocation11 + $0x1c] sm:$0xf]
        %v484 = vld [vmem:[#allocation13] sm:$0x1]
        %v486 = vlaneseq
        %v487 = vshrl.u32 %v486, 7
        %v488 = vsub.s32 0, %v487
        %v489 = vrot.slane %v484, %v488
        %v499 = vunpack.c.l.b16 %v476
        %v500 = vunpack.c.l.b16 %v477
        %v501 = vunpack.c.l.b16 %v478
        %v502 = vunpack.c.l.b16 %v479
        %v503 = vunpack.c.l.b16 %v480
        %v504 = vunpack.c.l.b16 %v481
        %v505 = vunpack.c.l.b16 %v482
        %v506 = vunpack.c.l.b16 %v483
        %v507 = vpack.c.b16 %v500, %v499
        %v508 = vpack.c.b16 %v502, %v501
        %v509 = vpack.c.b16 %v504, %v503
        %v510 = vpack.c.b16 %v506, %v505
        %vm515 = vcmask 523264
        %v517 = vsel %vm515, %v475, 0
        %519 = vmatprep.subr.bf16.mxu0 0
        %520 = vmatpush1.bf16.msra.mxu0 %v507
        %521 = vmatprep.subr.bf16.mxu0 0
        %522 = vmatpush1.bf16.msra.mxu0 %v508
        %523 = vmatprep.subr.bf16.mxu0 0
        %524 = vmatpush1.bf16.msra.mxu0 %v509
        %525 = vmatprep.subr.bf16.mxu0 0
        %526 = vmatpush1.bf16.msra.mxu0 %v510
        %527 = vmatprep.subr.bf16.mxu0 0
        %528 = vmatpush1.bf16.msra.mxu0 0
        %529 = vmatprep.subr.bf16.mxu0 0
        %530 = vmatpush1.bf16.msra.mxu0 0
        %531 = vmatprep.subr.bf16.mxu0 0
        %532 = vmatpush1.bf16.msra.mxu0 0
        %533 = vmatprep.subr.bf16.mxu0 0
        %534 = vmatpush1.bf16.msra.mxu0 0
        %535 = vmatprep.subr.bf16.mxu0 0
        %536 = vmatpush1.bf16.msra.mxu0 0
        %537 = vmatprep.subr.bf16.mxu0 0
        %538 = vmatpush1.bf16.msra.mxu0 0
        %539 = vmatprep.subr.bf16.mxu0 0
        %540 = vmatpush1.bf16.msra.mxu0 0
        %541 = vmatprep.subr.bf16.mxu0 0
        %542 = vmatpush1.bf16.msra.mxu0 0
        %543 = vmatprep.subr.bf16.mxu0 0
        %544 = vmatpush1.bf16.msra.mxu0 0
        %545 = vmatprep.subr.bf16.mxu0 0
        %546 = vmatpush1.bf16.msra.mxu0 0
        %547 = vmatprep.subr.bf16.mxu0 0
        %548 = vmatpush1.bf16.msra.mxu0 0
        %549 = vmatprep.subr.bf16.mxu0 0
        %550 = vmatpush1.bf16.msra.mxu0 0
        %551 = vmatprep.mubr.bf16.mxu0 0
        %552 = vmatmul.mubr.bf16.gmra.mrb[0].mxu0 %v517
        %v553 = vpop.f32.mrb[0].mxu0
        %v554 = vadd.f32 %v489, %v553
        %v555 = vpop.f32.mrb[0].mxu0
        %v556 = vpop.f32.mrb[0].mxu0
        %v557 = vpop.f32.mrb[0].mxu0
        %558 = vdwg.mxu0
        %v559 = vadd.f32 %v375, %v554
        %v560 = vpack.c.bf16 %v559, %v559
        %vm561 = vcmask 257024
        %562 = vst.msk [vmem:[%s372] sm:$0xf] %vm561, %v560
        %s563 = sand.u32 %s187, 1
        %s564 = scalar_lea.sflag [#allocation4], %s563
        %s565 = sand.u32 %s187, 1
        %s566 = smul.addr %s565, 4
        %s567 = scalar_lea.vmem [#allocation14], %s566
        // Predicated region
        $region77: #{baseline_encoder.7} parent=47 // pred_check
          %p568 = pneg %p197
        $region78: #{baseline_encoder.7} parent=47 // pred_check_branch
          %570 = sbr.rel (%p568) target = $region80
        $region79: #{baseline_encoder.7} parent=47 // pred_region
          %s572 = ssub.s32 64, 64
          %573 = vsyncadd %s564, %s572
          %s574 = smul.addr %s27, 64
          %s575 = scalar_lea.hbm %s7, %s574
          %s577 = sshll.u32 %s567, 4
          %s578 = int_to_ptr.vmem [resolvable:$true] %s577
          %580 = dma.vmem_to_hbm [thread:$0]  %s578, 64, %s575, %s564
        $region80: #{baseline_encoder.7} parent=47 // pred_fallthru
          _
      $region48: #{baseline_encoder.7} parent=5 // pred_fallthru
        _
      %p581 = scmp.le.s32.totalorder 2, %s22
      // Predicated region
      $region81: #{baseline_encoder.7} parent=5 // pred_check
        %p582 = pneg %p581
      $region82: #{baseline_encoder.7} parent=5 // pred_check_branch
        %584 = sbr.rel (%p582) target = $region84
      $region83: #{baseline_encoder.7} parent=5 // pred_region
        %s585 = ssub.s32 %s22, 2
        // Predicated region
        $region85: #{baseline_encoder.7} parent=83 // pred_check
          %p586 = pneg %p203
        $region86: #{baseline_encoder.7} parent=83 // pred_check_branch
          %588 = sbr.rel (%p586) target = $region88
        $region87: #{baseline_encoder.7} parent=83 // pred_region
          %s589 = sand.u32 %s188, 1
          %s590 = scalar_lea.sflag [#allocation4], %s589
          %s591 = sand.u32 %s188, 1
          %s592 = smul.addr %s591, 4
          %s593 = scalar_lea.vmem [#allocation14], %s592
          %594 = dma.done %s590, 64
        $region88: #{baseline_encoder.7} parent=83 // pred_fallthru
          _
      $region84: #{baseline_encoder.7} parent=5 // pred_fallthru
        _
    $region6: #{baseline_encoder.7} parent=1 // loop_footer
      %s26 = sadd.s32 1, %s22
    $region7: #{baseline_encoder.7} parent=1 // loop_footer_branch
      %21 = sbr.rel target = $region3
    $region8: #{baseline_encoder.7} parent=1 // loop_exit
      _
    %595 = vsyncpa [#allocation3], 1
    %s596 = scalar_lea.sflag [#allocation3], 1
    %597 = vsyncpa %s596, 1
    %598 = vsyncpa [#allocation6], 1
    %599 = vsyncpa [#allocation9], 1
    %600 = vsyncpa [#allocation12], 1
    %601 = vsyncpa [#allocation4], 1
    %s602 = scalar_lea.sflag [#allocation4], 1
    %603 = vsyncpa %s602, 1

// kernel: baseline_encoder.11
$region0: #{baseline_encoder.11}
  #allocation0 [shape = 'u32[]', space=smem, size = 0x4, offset = 0x4, fixed_abs, tag = 'smem constant byte address 0x4 - core index']
  #allocation1 [shape = 'u32[144,128]{1,0:T(1,128)}', space=vmem, size = 0x12000, scoped, tag = 'internal scratch']
  %s0 = inlined_call_operand.hbm [shape: bf16[16,32], index: 0, kind: input, shape index: {}]
  %s1 = inlined_call_operand.hbm [shape: f32[1,32], index: 1, kind: input, shape index: {}]
  %s2 = inlined_call_operand.hbm [shape: f32[1,32], index: 2, kind: input, shape index: {}]
  %s3 = inlined_call_operand.hbm [shape: f32[16,32], index: 3, kind: output, shape index: {}]
  %s4 = sld [smem:[#allocation0]]
  $region57: #{baseline_encoder.11} parent=0
    _
  %s6 = ssub.s32 1, %s4
  %s7 = scalar_select 0, %s6, %s4
  $region1: #{baseline_encoder.11} parent=0
    #allocation2 [shape = 'u8[4096]{0}', space=vmem, size = 0x1000, scoped, tag = 'input window, operand 0']
    #allocation3 [shape = 's32[2]{0}', space=sflag, size = 0x8, scoped, tag = 'scoped memory for baseline_encoder.11']
    #allocation4 [shape = 's32[2]{0}', space=sflag, size = 0x8, scoped, tag = 'scoped memory for baseline_encoder.11']
    #allocation5 [shape = 'u8[512]{0}', space=vmem, size = 0x400, scoped, tag = 'input window, operand 1, single buffered']
    #allocation6 [shape = 's32[1]{0}', space=sflag, size = 0x4, scoped, tag = 'scoped memory for baseline_encoder.11']
    #allocation7 [shape = 'u8[512]{0}', space=vmem, size = 0x400, scoped, tag = 'input window, operand 2, single buffered']
    #allocation8 [shape = 'u8[8192]{0}', space=vmem, size = 0x2000, scoped, tag = 'output window, operand 0']
    %8 = vsyncpa [#allocation3], 0
    %s9 = scalar_lea.sflag [#allocation3], 1
    %10 = vsyncpa %s9, 0
    %11 = vsyncpa [#allocation6], 0
    %12 = vsyncpa [#allocation4], 0
    %s13 = scalar_lea.sflag [#allocation4], 1
    %14 = vsyncpa %s13, 0
    loop: start=0, step=1, limit=4
    $region2: #{baseline_encoder.11} parent=1 // loop_pre_header
      _
    $region3: #{baseline_encoder.11} parent=1 // loop_header
      %s16 = sphi 0, %s20
      %p17 = scmp.ge.s32.totalorder %s16, 4
      %s26 = sphi 0, %s28
      %s29 = sphi 0, %s26
      %s30 = sphi 0, %s29
      %s46 = sphi 0, %s30
      %s50 = sphi 0, %s50
      %s52 = sphi 0, %s50
      %s53 = sphi 0, %s52
      %s67 = sphi 0, %s53
      %s71 = sphi 0, %s71
      %s73 = sphi 0, %s71
      %s74 = sphi 0, %s73
      %s88 = sphi 0, %s74
      %s94 = sphi 0, %s96
      %s97 = sphi 0, %s94
      %s98 = sphi 0, %s97
      %s114 = sphi 0, %s98
    $region4: #{baseline_encoder.11} parent=1 // loop_header_branch
      %19 = sbr.rel (%p17) target = $region8
    $region5: #{baseline_encoder.11} parent=1 // loop_body
      %s21 = ssub.s32 %s16, 1
      %s22 = ssub.s32 %s16, 2
      %s23 = sadd.s32 %s16, 1
      %s24 = ssub.s32 %s16, %s23
      %p25 = scmp.eq.s32.totalorder %s24, 0
      %s27 = sadd.s32 %s26, 1
      %s28 = scalar_select %p25, %s26, %s27
      %p31 = pneg %p25
      %p32 = scmp.eq.s32.totalorder %s16, 1
      %p33 = por %p31, %p32
      %p34 = scmp.ne.s32.totalorder %s26, %s29
      %p35 = scmp.eq.s32.totalorder %s16, 0
      %p36 = por %p34, %p35
      %p37 = scmp.ne.s32.totalorder %s26, %s29
      %p38 = scmp.eq.s32.totalorder %s21, 1
      %p39 = por %p37, %p38
      %p40 = scmp.ne.s32.totalorder %s29, %s30
      %p41 = scmp.eq.s32.totalorder %s21, 0
      %p42 = por %p40, %p41
      %p43 = scmp.ne.s32.totalorder %s29, %s30
      %p44 = scmp.eq.s32.totalorder %s22, 1
      %p45 = por %p43, %p44
      %p47 = scmp.ne.s32.totalorder %s30, %s46
      %p48 = scmp.eq.s32.totalorder %s22, 0
      %p49 = por %p47, %p48
      %s51 = sadd.s32 %s50, 1
      %p54 = scmp.eq.s32.totalorder %s16, 1
      %p55 = scmp.ne.s32.totalorder %s50, %s52
      %p56 = scmp.eq.s32.totalorder %s16, 0
      %p57 = por %p55, %p56
      %p58 = scmp.ne.s32.totalorder %s50, %s52
      %p59 = scmp.eq.s32.totalorder %s21, 1
      %p60 = por %p58, %p59
      %p61 = scmp.ne.s32.totalorder %s52, %s53
      %p62 = scmp.eq.s32.totalorder %s21, 0
      %p63 = por %p61, %p62
      %p64 = scmp.ne.s32.totalorder %s52, %s53
      %p65 = scmp.eq.s32.totalorder %s22, 1
      %p66 = por %p64, %p65
      %p68 = scmp.ne.s32.totalorder %s53, %s67
      %p69 = scmp.eq.s32.totalorder %s22, 0
      %p70 = por %p68, %p69
      %s72 = sadd.s32 %s71, 1
      %p75 = scmp.eq.s32.totalorder %s16, 1
      %p76 = scmp.ne.s32.totalorder %s71, %s73
      %p77 = scmp.eq.s32.totalorder %s16, 0
      %p78 = por %p76, %p77
      %p79 = scmp.ne.s32.totalorder %s71, %s73
      %p80 = scmp.eq.s32.totalorder %s21, 1
      %p81 = por %p79, %p80
      %p82 = scmp.ne.s32.totalorder %s73, %s74
      %p83 = scmp.eq.s32.totalorder %s21, 0
      %p84 = por %p82, %p83
      %p85 = scmp.ne.s32.totalorder %s73, %s74
      %p86 = scmp.eq.s32.totalorder %s22, 1
      %p87 = por %p85, %p86
      %p89 = scmp.ne.s32.totalorder %s74, %s88
      %p90 = scmp.eq.s32.totalorder %s22, 0
      %p91 = por %p89, %p90
      %s92 = ssub.s32 %s16, %s23
      %p93 = scmp.eq.s32.totalorder %s92, 0
      %s95 = sadd.s32 %s94, 1
      %s96 = scalar_select %p93, %s94, %s95
      %p99 = pneg %p93
      %p100 = scmp.eq.s32.totalorder %s16, 1
      %p101 = por %p99, %p100
      %p102 = scmp.ne.s32.totalorder %s94, %s97
      %p103 = scmp.eq.s32.totalorder %s16, 0
      %p104 = por %p102, %p103
      %p105 = scmp.ne.s32.totalorder %s94, %s97
      %p106 = scmp.eq.s32.totalorder %s21, 1
      %p107 = por %p105, %p106
      %p108 = scmp.ne.s32.totalorder %s97, %s98
      %p109 = scmp.eq.s32.totalorder %s21, 0
      %p110 = por %p108, %p109
      %p111 = scmp.ne.s32.totalorder %s97, %s98
      %p112 = scmp.eq.s32.totalorder %s22, 1
      %p113 = por %p111, %p112
      %p115 = scmp.ne.s32.totalorder %s98, %s114
      %p116 = scmp.eq.s32.totalorder %s22, 0
      %p117 = por %p115, %p116
      %p118 = scmp.le.s32.totalorder 1, %s16
      %p119 = scmp.lt.s32.totalorder %s16, 3
      %p120 = pnand %p118, %p119
      %p121 = pneg %p120
      // Predicated region
      $region9: #{baseline_encoder.11} parent=5 // pred_check
        _
      $region10: #{baseline_encoder.11} parent=5 // pred_check_branch
        %123 = sbr.rel (%p120) target = $region12
      $region11: #{baseline_encoder.11} parent=5 // pred_region
        %s124 = ssub.s32 %s16, 1
        // Predicated region
        $region13: #{baseline_encoder.11} parent=11 // pred_check
          %p125 = pneg %p63
        $region14: #{baseline_encoder.11} parent=11 // pred_check_branch
          %127 = sbr.rel (%p125) target = $region16
        $region15: #{baseline_encoder.11} parent=11 // pred_region
          %s129 = ssub.s32 16, 16
          %130 = vsyncadd [#allocation6], %s129
          %s132 = sshll.u32 [#allocation5], 4
          %s133 = int_to_ptr.vmem [resolvable:$true] %s132
          %135 = dma.hbm_to_vmem [thread:$0]  %s1, 16, %s133, [#allocation6]
        $region16: #{baseline_encoder.11} parent=11 // pred_fallthru
          _
        // Predicated region
        $region17: #{baseline_encoder.11} parent=11 // pred_check
          %p136 = pneg %p84
        $region18: #{baseline_encoder.11} parent=11 // pred_check_branch
          %138 = sbr.rel (%p136) target = $region20
        $region19: #{baseline_encoder.11} parent=11 // pred_region
          %s140 = ssub.s32 16, 16
          %141 = vsyncadd [#allocation6], %s140
          %s143 = sshll.u32 [#allocation7], 4
          %s144 = int_to_ptr.vmem [resolvable:$true] %s143
          %146 = dma.hbm_to_vmem [thread:$0]  %s2, 16, %s144, [#allocation6]
        $region20: #{baseline_encoder.11} parent=11 // pred_fallthru
          _
      $region12: #{baseline_encoder.11} parent=5 // pred_fallthru
        _
      %p147 = scmp.lt.s32.totalorder %s16, 2
      // Predicated region
      $region21: #{baseline_encoder.11} parent=5 // pred_check
        %p148 = pneg %p147
      $region22: #{baseline_encoder.11} parent=5 // pred_check_branch
        %150 = sbr.rel (%p148) target = $region24
      $region23: #{baseline_encoder.11} parent=5 // pred_region
        // Predicated region
        $region25: #{baseline_encoder.11} parent=23 // pred_check
          %p151 = pneg %p36
        $region26: #{baseline_encoder.11} parent=23 // pred_check_branch
          %153 = sbr.rel (%p151) target = $region28
        $region27: #{baseline_encoder.11} parent=23 // pred_region
          %s154 = sand.u32 %s26, 1
          %s155 = scalar_lea.sflag [#allocation3], %s154
          %s156 = sand.u32 %s26, 1
          %s157 = smul.addr %s156, 4
          %s158 = scalar_lea.vmem [#allocation2], %s157
          %s160 = ssub.s32 64, 64
          %161 = vsyncadd %s155, %s160
          %s162 = smul.addr %s16, 64
          %s163 = scalar_lea.hbm %s0, %s162
          %s165 = sshll.u32 %s158, 4
          %s166 = int_to_ptr.vmem [resolvable:$true] %s165
          %168 = dma.hbm_to_vmem [thread:$0]  %s163, 64, %s166, %s155
        $region28: #{baseline_encoder.11} parent=23 // pred_fallthru
          _
      $region24: #{baseline_encoder.11} parent=5 // pred_fallthru
        _
      %p169 = scmp.le.s32.totalorder 1, %s16
      %p170 = scmp.lt.s32.totalorder %s16, 3
      %p171 = pnand %p169, %p170
      %p172 = pneg %p171
      // Predicated region
      $region29: #{baseline_encoder.11} parent=5 // pred_check
        _
      $region30: #{baseline_encoder.11} parent=5 // pred_check_branch
        %174 = sbr.rel (%p171) target = $region32
      $region31: #{baseline_encoder.11} parent=5 // pred_region
        %s175 = ssub.s32 %s16, 1
        %s176 = sand.u32 %s29, 1
        %s177 = scalar_lea.sflag [#allocation3], %s176
        %s178 = sand.u32 %s29, 1
        %s179 = smul.addr %s178, 4
        %s180 = scalar_lea.vmem [#allocation2], %s179
        // Predicated region
        $region33: #{baseline_encoder.11} parent=31 // pred_check
          %p181 = pneg %p42
        $region34: #{baseline_encoder.11} parent=31 // pred_check_branch
          %183 = sbr.rel (%p181) target = $region36
        $region35: #{baseline_encoder.11} parent=31 // pred_region
          %184 = dma.done %s177, 64
        $region36: #{baseline_encoder.11} parent=31 // pred_fallthru
          _
        // Predicated region
        $region37: #{baseline_encoder.11} parent=31 // pred_check
          %p185 = pneg %p63
        $region38: #{baseline_encoder.11} parent=31 // pred_check_branch
          %187 = sbr.rel (%p185) target = $region40
        $region39: #{baseline_encoder.11} parent=31 // pred_region
          %188 = dma.done [#allocation6], 16
        $region40: #{baseline_encoder.11} parent=31 // pred_fallthru
          _
        // Predicated region
        $region41: #{baseline_encoder.11} parent=31 // pred_check
          %p189 = pneg %p84
        $region42: #{baseline_encoder.11} parent=31 // pred_check_branch
          %191 = sbr.rel (%p189) target = $region44
        $region43: #{baseline_encoder.11} parent=31 // pred_region
          %192 = dma.done [#allocation6], 16
        $region44: #{baseline_encoder.11} parent=31 // pred_fallthru
          _
        %s193 = sand.u32 %s29, 1
        %s194 = scalar_lea.sflag [#allocation3], %s193
        %s195 = sand.u32 %s29, 1
        %s196 = smul.addr %s195, 4
        %s197 = scalar_lea.vmem [#allocation2], %s196
        %p198 = pneg %p42
        %p199 = pneg %p39
        %p200 = pneg %p63
        %p201 = pneg %p60
        %p202 = pneg %p84
        %p203 = pneg %p81
        %p204 = pneg %p110
        %p205 = pneg %p107
        %s206 = sand.u32 %s97, 1
        %s207 = scalar_lea.sflag [#allocation4], %s206
        %s208 = sand.u32 %s97, 1
        %s209 = smul.addr %s208, 8
        %s210 = scalar_lea.vmem [#allocation8], %s209
        %v211 = vld [vmem:[%s180] sm:$0xf]
        %v212 = vunpack.c.l.bf16 %v211
        %v213 = vld [vmem:[#allocation5] sm:$0x1]
        %v214 = vld [vmem:[#allocation7] sm:$0x1]
        %vm215 = vcmask 261120
        %v216 = vsel %vm215, %v212, 0.0
        %217 = vadd.xlane.f32.xlu0 %v216
        %v218 = vpop.xlane.xlu0 %217
        %v219 = vrcp.pop 32.0
        %v220 = vmul.f32 %v218, %v219
        %v221 = vsub.f32 %v212, %v220
        %v222 = vmul.f32 %v221, %v221
        %v223 = vsel %vm215, %v222, 0.0
        %224 = vadd.xlane.f32.xlu0 %v223
        %v225 = vpop.xlane.xlu0 %224
        %v226 = vmul.f32 %v225, %v219
        %v227 = vadd.f32 %v226, 1e-05
        %v228 = vrsqrt.pop %v227
        %v229 = vmul.f32 %v221, %v228
        %v231 = vlaneseq
        %v232 = vshrl.u32 %v231, 7
        %v233 = vsub.s32 0, %v232
        %v234 = vrot.slane %v213, %v233
        %v236 = vmul.f32 %v229, %v234
        %v238 = vlaneseq
        %v239 = vshrl.u32 %v238, 7
        %v240 = vsub.s32 0, %v239
        %v241 = vrot.slane %v214, %v240
        %v243 = vadd.f32 %v236, %v241
        %244 = vst.msk [vmem:[%s210] sm:$0xff] %vm215, %v243
        %s245 = sand.u32 %s97, 1
        %s246 = scalar_lea.sflag [#allocation4], %s245
        %s247 = sand.u32 %s97, 1
        %s248 = smul.addr %s247, 8
        %s249 = scalar_lea.vmem [#allocation8], %s248
        // Predicated region
        $region45: #{baseline_encoder.11} parent=31 // pred_check
          %p250 = pneg %p107
        $region46: #{baseline_encoder.11} parent=31 // pred_check_branch
          %252 = sbr.rel (%p250) target = $region48
        $region47: #{baseline_encoder.11} parent=31 // pred_region
          %s254 = ssub.s32 128, 128
          %255 = vsyncadd %s246, %s254
          %s256 = smul.addr %s21, 128
          %s257 = scalar_lea.hbm %s3, %s256
          %s259 = sshll.u32 %s249, 4
          %s260 = int_to_ptr.vmem [resolvable:$true] %s259
          %262 = dma.vmem_to_hbm [thread:$0]  %s260, 128, %s257, %s246
        $region48: #{baseline_encoder.11} parent=31 // pred_fallthru
          _
      $region32: #{baseline_encoder.11} parent=5 // pred_fallthru
        _
      %p263 = scmp.le.s32.totalorder 2, %s16
      // Predicated region
      $region49: #{baseline_encoder.11} parent=5 // pred_check
        %p264 = pneg %p263
      $region50: #{baseline_encoder.11} parent=5 // pred_check_branch
        %266 = sbr.rel (%p264) target = $region52
      $region51: #{baseline_encoder.11} parent=5 // pred_region
        %s267 = ssub.s32 %s16, 2
        // Predicated region
        $region53: #{baseline_encoder.11} parent=51 // pred_check
          %p268 = pneg %p113
        $region54: #{baseline_encoder.11} parent=51 // pred_check_branch
          %270 = sbr.rel (%p268) target = $region56
        $region55: #{baseline_encoder.11} parent=51 // pred_region
          %s271 = sand.u32 %s98, 1
          %s272 = scalar_lea.sflag [#allocation4], %s271
          %s273 = sand.u32 %s98, 1
          %s274 = smul.addr %s273, 8
          %s275 = scalar_lea.vmem [#allocation8], %s274
          %276 = dma.done %s272, 128
        $region56: #{baseline_encoder.11} parent=51 // pred_fallthru
          _
      $region52: #{baseline_encoder.11} parent=5 // pred_fallthru
        _
    $region6: #{baseline_encoder.11} parent=1 // loop_footer
      %s20 = sadd.s32 1, %s16
    $region7: #{baseline_encoder.11} parent=1 // loop_footer_branch
      %15 = sbr.rel target = $region3
    $region8: #{baseline_encoder.11} parent=1 // loop_exit
      _
    %277 = vsyncpa [#allocation3], 1
    %s278 = scalar_lea.sflag [#allocation3], 1
    %279 = vsyncpa %s278, 1
    %280 = vsyncpa [#allocation6], 1
    %281 = vsyncpa [#allocation4], 1
    %s282 = scalar_lea.sflag [#allocation4], 1
    %283 = vsyncpa %s282, 1

</llo_original>
